<compile_context>
chip_gen: v7x
topology: tpu7x:2x2x1
jax: 0.10.0
libtpu: 0.0.40
codegen_flags: <defaults>
</compile_context>

<pallas_src>
import functools
import math

import jax
import jax.numpy as jnp
from jax.experimental import pallas as pl
from jax.experimental.pallas import tpu as pltpu


# ----------------------------- in-kernel helpers ----------------------------

def _layer_norm(z, g, b, eps):
    # LayerNorm over last dim, f32 statistics (PyTorch default eps=1e-5).
    mu = jnp.mean(z, axis=-1, keepdims=True)
    c = z - mu
    var = jnp.mean(c * c, axis=-1, keepdims=True)
    return c * jax.lax.rsqrt(var + eps) * g + b


def _multi_head_attention(q_in, k_in, v_in, mask,
                          wq, bq, wk, bk, wv, bv, wo, bo,
                          heads, d_k):
    """q_in:(Sq,D) k_in/v_in:(Sk,D) f32; mask:(Sq,Sk) int32 (0 = masked)."""
    bf16 = jnp.bfloat16
    scale = jnp.float32(1.0 / math.sqrt(d_k))

    q = jnp.dot(q_in.astype(bf16), wq, preferred_element_type=jnp.float32) + bq
    k = jnp.dot(k_in.astype(bf16), wk, preferred_element_type=jnp.float32) + bk
    v = jnp.dot(v_in.astype(bf16), wv, preferred_element_type=jnp.float32) + bv

    head_outs = []
    for h in range(heads):                       # static unroll; stays in vregs
        sl = slice(h * d_k, (h + 1) * d_k)
        qh = q[:, sl].astype(bf16)               # (Sq, dk)
        kh = k[:, sl].astype(bf16)               # (Sk, dk)
        vh = v[:, sl].astype(bf16)               # (Sk, dk)
        # scores = q @ k^T (contract on dk, no explicit transpose)
        s = jax.lax.dot_general(qh, kh, (((1,), (1,)), ((), ())),
                                preferred_element_type=jnp.float32)   # (Sq, Sk)
        # reference order: masked_fill(-1e9) BEFORE dividing by sqrt(d_k)
        s = jnp.where(mask == 0, jnp.float32(-1e9), s) * scale
        m = jnp.max(s, axis=-1, keepdims=True)
        p = jnp.exp(s - m)                       # unnormalized probabilities
        l = jnp.sum(p, axis=-1, keepdims=True)
        oh = jnp.dot(p.astype(bf16), vh, preferred_element_type=jnp.float32)
        # deferred normalization: scale (Sq, dk) output instead of (Sq, Sk) probs
        head_outs.append(oh * pl.reciprocal(l, approx=True))
    o = jnp.concatenate(head_outs, axis=-1)      # (Sq, D)
    return jnp.dot(o.astype(bf16), wo, preferred_element_type=jnp.float32) + bo


# ------------------------------ fused kernel --------------------------------

def _decoder_block_kernel(x_ref, ev_ref, ek_ref, tm_ref, sm_ref,
                          w_ref, b_ref, ffw1_ref, ffb1_ref, ffw2_ref,
                          o_ref, *, heads, d_k, eps):
    bf16 = jnp.bfloat16
    x = x_ref[0]            # (S, D)  decoder input (this batch element)
    enc_v = ev_ref[0]       # (Se, D) encoder output (value path)
    enc_k = ek_ref[0]       # (Se, D) encoder output (key path)
    tgt_mask = tm_ref[0]    # (S, S)  int32
    src_mask = sm_ref[0]    # (S, Se) int32

    def bias(i):            # (1, D) f32 row of the packed bias/LN-param table
        return b_ref[i:i + 1, :]

    # TODO(synk): nn.Dropout layers are identity here (inference / eval mode).

    # --- 1) masked multi-head self attention + Add & LayerNorm (norm) -------
    mmha = _multi_head_attention(x, x, x, tgt_mask,
                                 w_ref[0], bias(0), w_ref[1], bias(1),
                                 w_ref[2], bias(2), w_ref[3], bias(3),
                                 heads, d_k)
    x1 = _layer_norm(x + mmha, bias(4), bias(5), eps)

    # --- 2) encoder-decoder attention + Add & LayerNorm (norm1) -------------
    # SelfAttention.forward(value=enc_v, key=enc_k, query=x1, mask=src_mask)
    mha = _multi_head_attention(x1, enc_k, enc_v, src_mask,
                                w_ref[4], bias(6), w_ref[5], bias(7),
                                w_ref[6], bias(8), w_ref[7], bias(9),
                                heads, d_k)
    x2 = _layer_norm(x1 + mha, bias(10), bias(11), eps)

    # --- 3) position-wise feed forward + Add & LayerNorm (norm2) ------------
    h1 = jnp.dot(x2.astype(bf16), ffw1_ref[...],
                 preferred_element_type=jnp.float32)
    h1 = jnp.maximum(h1 + ffb1_ref[...], 0.0)                    # ReLU
    ff = jnp.dot(h1.astype(bf16), ffw2_ref[...],
                 preferred_element_type=jnp.float32) + bias(12)
    out = _layer_norm(x2 + ff, bias(13), bias(14), eps)

    o_ref[0] = out.astype(o_ref.dtype)


# ------------------------------ host wrapper ---------------------------------

def decoder_block_fwd(params, x, enc_value, enc_key, src_mask, tgt_mask, heads):
    B, S, D = x.shape
    Se = enc_value.shape[1]
    F = params["ff_w1"].shape[1]
    assert D % heads == 0
    d_k = D // heads

    kernel = functools.partial(_decoder_block_kernel,
                               heads=heads, d_k=d_k, eps=1e-5)
    return pl.pallas_call(
        kernel,
        out_shape=jax.ShapeDtypeStruct((B, S, D), jnp.float32),
        grid=(B,),
        in_specs=[
            pl.BlockSpec((1, S, D), lambda b: (b, 0, 0)),    # x (decoder input)
            pl.BlockSpec((1, Se, D), lambda b: (b, 0, 0)),   # encoder value
            pl.BlockSpec((1, Se, D), lambda b: (b, 0, 0)),   # encoder key
            pl.BlockSpec((1, S, S), lambda b: (b, 0, 0)),    # tgt mask
            pl.BlockSpec((1, S, Se), lambda b: (b, 0, 0)),   # src mask
            pl.BlockSpec((8, D, D), lambda b: (0, 0, 0)),    # packed attn weights (bf16)
            pl.BlockSpec((15, D), lambda b: (0, 0)),         # packed biases / LN params (f32)
            pl.BlockSpec((D, F), lambda b: (0, 0)),          # ff_w1 (bf16)
            pl.BlockSpec((1, F), lambda b: (0, 0)),          # ff_b1 (f32)
            pl.BlockSpec((F, D), lambda b: (0, 0)),          # ff_w2 (bf16)
        ],
        out_specs=pl.BlockSpec((1, S, D), lambda b: (b, 0, 0)),
        compiler_params=pltpu.CompilerParams(
            dimension_semantics=("parallel",),               # batch -> both TCs on v7x
            vmem_limit_bytes=32 * 1024 * 1024,
        ),
    )(x, enc_value, enc_key, tgt_mask, src_mask,
      params["W"], params["bvec"],
      params["ff_w1"], params["ff_b1"], params["ff_w2"])


# ----------------------------- parameter init --------------------------------

def init_params(key, d_model, d_ff):
    keys = jax.random.split(key, 10)

    def lin(k, d_in, d_out):
        kw, kb = jax.random.split(k)
        w = jax.random.normal(kw, (d_in, d_out), jnp.float32) * 0.02  # = torch weight.T
        b = jax.random.normal(kb, (d_out,), jnp.float32) * 0.02
        return w, b

    # 8 (D, D) projections: self-attn q,k,v,o then cross-attn q,k,v,o
    ws, bs = [], []
    for i in range(8):
        w, b = lin(keys[i], d_model, d_model)
        ws.append(w)
        bs.append(b)
    ff_w1, ff_b1 = lin(keys[8], d_model, d_ff)
    ff_w2, ff_b2 = lin(keys[9], d_ff, d_model)

    ones = jnp.ones((d_model,), jnp.float32)
    zeros = jnp.zeros((d_model,), jnp.float32)

    W = jnp.stack(ws).astype(jnp.bfloat16)                    # (8, D, D)
    bvec = jnp.stack([
        bs[0], bs[1], bs[2], bs[3],     # 0-3  : self-attn q,k,v,o biases
        ones, zeros,                    # 4-5  : DecoderBlock.norm  gamma/beta
        bs[4], bs[5], bs[6], bs[7],     # 6-9  : cross-attn q,k,v,o biases
        ones, zeros,                    # 10-11: EncoderBlock.norm1 gamma/beta
        ff_b2,                          # 12   : FFN second linear bias
        ones, zeros,                    # 13-14: EncoderBlock.norm2 gamma/beta
    ]).astype(jnp.float32)              # (15, D)

    return {
        "W": W,
        "bvec": bvec,
        "ff_w1": ff_w1.astype(jnp.bfloat16),
        "ff_b1": ff_b1.reshape(1, d_ff).astype(jnp.float32),
        "ff_w2": ff_w2.astype(jnp.bfloat16),
    }


# --------------------------------- main ---------------------------------------

if __name__ == "__main__":
    d_model, heads, d_ff = 32, 4, 64
    B, S_dec, S_enc = 2, 8, 8

    root = jax.random.PRNGKey(0)
    kp, kx, kv, kk = jax.random.split(root, 4)
    params = init_params(kp, d_model, d_ff)

    x = jax.random.normal(kx, (B, S_dec, d_model), jnp.float32)          # decoder input
    enc_value = jax.random.normal(kv, (B, S_enc, d_model), jnp.float32)  # from encoder
    enc_key = jax.random.normal(kk, (B, S_enc, d_model), jnp.float32)    # from encoder

    # tgt_mask: causal; src_mask: no padding (all ones). 0 => masked.
    tgt_mask = jnp.tile(jnp.tril(jnp.ones((S_dec, S_dec), jnp.int32))[None], (B, 1, 1))
    src_mask = jnp.ones((B, S_dec, S_enc), jnp.int32)

    out = decoder_block_fwd(params, x, enc_value, enc_key, src_mask, tgt_mask, heads)
    jax.block_until_ready(out)
    assert out.shape == (B, S_dec, d_model)
    print("KERNEL_OK")
</pallas_src>

<mosaic_0001>
module attributes {stable_mosaic.version = 11 : i64} {
  func.func @_decoder_block_kernel(%arg0: i32, %arg1: memref<1x8x32xf32, #tpu.memory_space<vmem>>, %arg2: memref<1x8x32xf32, #tpu.memory_space<vmem>>, %arg3: memref<1x8x32xf32, #tpu.memory_space<vmem>>, %arg4: memref<1x8x8xi32, #tpu.memory_space<vmem>>, %arg5: memref<1x8x8xi32, #tpu.memory_space<vmem>>, %arg6: memref<8x32x32xbf16, #tpu.memory_space<vmem>>, %arg7: memref<15x32xf32, #tpu.memory_space<vmem>>, %arg8: memref<32x64xbf16, #tpu.memory_space<vmem>>, %arg9: memref<1x64xf32, #tpu.memory_space<vmem>>, %arg10: memref<64x32xbf16, #tpu.memory_space<vmem>>, %arg11: memref<1x8x32xf32, #tpu.memory_space<vmem>>) attributes {dimension_semantics = [#tpu.dimension_semantics<parallel>], iteration_bounds = array<i64: 2>, scalar_prefetch = 0 : i64, scratch_operands = 0 : i64, tpu.core_type = #tpu.core_type<tc>, window_params = [{transform_indices = @transform_0, window_bounds = array<i64: 1, 8, 32>}, {transform_indices = @transform_1, window_bounds = array<i64: 1, 8, 32>}, {transform_indices = @transform_2, window_bounds = array<i64: 1, 8, 32>}, {transform_indices = @transform_3, window_bounds = array<i64: 1, 8, 8>}, {transform_indices = @transform_4, window_bounds = array<i64: 1, 8, 8>}, {pipeline_mode = #tpu.pipeline_mode<synchronous>, transform_indices = @transform_5, window_bounds = array<i64: 8, 32, 32>}, {pipeline_mode = #tpu.pipeline_mode<synchronous>, transform_indices = @transform_6, window_bounds = array<i64: 15, 32>}, {pipeline_mode = #tpu.pipeline_mode<synchronous>, transform_indices = @transform_7, window_bounds = array<i64: 32, 64>}, {pipeline_mode = #tpu.pipeline_mode<synchronous>, transform_indices = @transform_8, window_bounds = array<i64: 1, 64>}, {pipeline_mode = #tpu.pipeline_mode<synchronous>, transform_indices = @transform_9, window_bounds = array<i64: 64, 32>}, {transform_indices = @transform_10, window_bounds = array<i64: 1, 8, 32>}]} {
    %c0 = arith.constant 0 : index
    %c0_0 = arith.constant 0 : index
    %c0_1 = arith.constant 0 : index
    %0 = vector.load %arg1[%c0, %c0_0, %c0_1] : memref<1x8x32xf32, #tpu.memory_space<vmem>>, vector<1x8x32xf32>
    %1 = vector.shape_cast %0 : vector<1x8x32xf32> to vector<8x32xf32>
    %c0_2 = arith.constant 0 : index
    %c0_3 = arith.constant 0 : index
    %c0_4 = arith.constant 0 : index
    %2 = vector.load %arg2[%c0_2, %c0_3, %c0_4] : memref<1x8x32xf32, #tpu.memory_space<vmem>>, vector<1x8x32xf32>
    %3 = vector.shape_cast %2 : vector<1x8x32xf32> to vector<8x32xf32>
    %c0_5 = arith.constant 0 : index
    %c0_6 = arith.constant 0 : index
    %c0_7 = arith.constant 0 : index
    %4 = vector.load %arg3[%c0_5, %c0_6, %c0_7] : memref<1x8x32xf32, #tpu.memory_space<vmem>>, vector<1x8x32xf32>
    %5 = vector.shape_cast %4 : vector<1x8x32xf32> to vector<8x32xf32>
    %c0_8 = arith.constant 0 : index
    %c0_9 = arith.constant 0 : index
    %c0_10 = arith.constant 0 : index
    %6 = vector.load %arg4[%c0_8, %c0_9, %c0_10] : memref<1x8x8xi32, #tpu.memory_space<vmem>>, vector<1x8x8xi32>
    %7 = vector.shape_cast %6 : vector<1x8x8xi32> to vector<8x8xi32>
    %c0_11 = arith.constant 0 : index
    %c0_12 = arith.constant 0 : index
    %c0_13 = arith.constant 0 : index
    %8 = vector.load %arg5[%c0_11, %c0_12, %c0_13] : memref<1x8x8xi32, #tpu.memory_space<vmem>>, vector<1x8x8xi32>
    %9 = vector.shape_cast %8 : vector<1x8x8xi32> to vector<8x8xi32>
    %c0_14 = arith.constant 0 : index
    %c0_15 = arith.constant 0 : index
    %c0_16 = arith.constant 0 : index
    %10 = vector.load %arg6[%c0_14, %c0_15, %c0_16] : memref<8x32x32xbf16, #tpu.memory_space<vmem>>, vector<1x32x32xbf16>
    %11 = vector.shape_cast %10 : vector<1x32x32xbf16> to vector<32x32xbf16>
    %c0_17 = arith.constant 0 : index
    %c0_18 = arith.constant 0 : index
    %12 = vector.load %arg7[%c0_17, %c0_18] : memref<15x32xf32, #tpu.memory_space<vmem>>, vector<1x32xf32>
    %c1 = arith.constant 1 : index
    %c0_19 = arith.constant 0 : index
    %c0_20 = arith.constant 0 : index
    %13 = vector.load %arg6[%c1, %c0_19, %c0_20] : memref<8x32x32xbf16, #tpu.memory_space<vmem>>, vector<1x32x32xbf16>
    %14 = vector.shape_cast %13 : vector<1x32x32xbf16> to vector<32x32xbf16>
    %c1_21 = arith.constant 1 : index
    %c0_22 = arith.constant 0 : index
    %15 = vector.load %arg7[%c1_21, %c0_22] : memref<15x32xf32, #tpu.memory_space<vmem>>, vector<1x32xf32>
    %c2 = arith.constant 2 : index
    %c0_23 = arith.constant 0 : index
    %c0_24 = arith.constant 0 : index
    %16 = vector.load %arg6[%c2, %c0_23, %c0_24] : memref<8x32x32xbf16, #tpu.memory_space<vmem>>, vector<1x32x32xbf16>
    %17 = vector.shape_cast %16 : vector<1x32x32xbf16> to vector<32x32xbf16>
    %c2_25 = arith.constant 2 : index
    %c0_26 = arith.constant 0 : index
    %18 = vector.load %arg7[%c2_25, %c0_26] : memref<15x32xf32, #tpu.memory_space<vmem>>, vector<1x32xf32>
    %c3 = arith.constant 3 : index
    %c0_27 = arith.constant 0 : index
    %c0_28 = arith.constant 0 : index
    %19 = vector.load %arg6[%c3, %c0_27, %c0_28] : memref<8x32x32xbf16, #tpu.memory_space<vmem>>, vector<1x32x32xbf16>
    %20 = vector.shape_cast %19 : vector<1x32x32xbf16> to vector<32x32xbf16>
    %c3_29 = arith.constant 3 : index
    %c0_30 = arith.constant 0 : index
    %21 = vector.load %arg7[%c3_29, %c0_30] : memref<15x32xf32, #tpu.memory_space<vmem>>, vector<1x32xf32>
    %22 = arith.truncf %1 : vector<8x32xf32> to vector<8x32xbf16>
    %cst = arith.constant dense<0.000000e+00> : vector<8x32xf32>
    %23 = tpu.matmul %22, %11, %cst {dimension_numbers = #tpu.dot_dimension_numbers<[1], [0], [0], [1], [0, 0, 1, 1], [], []>} : vector<8x32xbf16>, vector<32x32xbf16>, vector<8x32xf32> -> vector<8x32xf32>
    %24 = vector.broadcast %12 : vector<1x32xf32> to vector<8x32xf32>
    %25 = arith.addf %23, %24 : vector<8x32xf32>
    %26 = arith.truncf %1 : vector<8x32xf32> to vector<8x32xbf16>
    %cst_31 = arith.constant dense<0.000000e+00> : vector<8x32xf32>
    %27 = tpu.matmul %26, %14, %cst_31 {dimension_numbers = #tpu.dot_dimension_numbers<[1], [0], [0], [1], [0, 0, 1, 1], [], []>} : vector<8x32xbf16>, vector<32x32xbf16>, vector<8x32xf32> -> vector<8x32xf32>
    %28 = vector.broadcast %15 : vector<1x32xf32> to vector<8x32xf32>
    %29 = arith.addf %27, %28 : vector<8x32xf32>
    %30 = arith.truncf %1 : vector<8x32xf32> to vector<8x32xbf16>
    %cst_32 = arith.constant dense<0.000000e+00> : vector<8x32xf32>
    %31 = tpu.matmul %30, %17, %cst_32 {dimension_numbers = #tpu.dot_dimension_numbers<[1], [0], [0], [1], [0, 0, 1, 1], [], []>} : vector<8x32xbf16>, vector<32x32xbf16>, vector<8x32xf32> -> vector<8x32xf32>
    %32 = vector.broadcast %18 : vector<1x32xf32> to vector<8x32xf32>
    %33 = arith.addf %31, %32 : vector<8x32xf32>
    %34 = vector.extract_strided_slice %25 {offsets = [0, 0], sizes = [8, 8], strides = [1, 1]} : vector<8x32xf32> to vector<8x8xf32>
    %35 = arith.truncf %34 : vector<8x8xf32> to vector<8x8xbf16>
    %36 = vector.extract_strided_slice %29 {offsets = [0, 0], sizes = [8, 8], strides = [1, 1]} : vector<8x32xf32> to vector<8x8xf32>
    %37 = arith.truncf %36 : vector<8x8xf32> to vector<8x8xbf16>
    %38 = vector.extract_strided_slice %33 {offsets = [0, 0], sizes = [8, 8], strides = [1, 1]} : vector<8x32xf32> to vector<8x8xf32>
    %39 = arith.truncf %38 : vector<8x8xf32> to vector<8x8xbf16>
    %cst_33 = arith.constant dense<0.000000e+00> : vector<8x8xf32>
    %40 = tpu.matmul %35, %37, %cst_33 {dimension_numbers = #tpu.dot_dimension_numbers<[1], [1], [0], [0], [0, 0, 1, 0], [], []>} : vector<8x8xbf16>, vector<8x8xbf16>, vector<8x8xf32> -> vector<8x8xf32>
    %c0_i32 = arith.constant 0 : i32
    %41 = vector.broadcast %c0_i32 : i32 to vector<8x8xi32>
    %42 = arith.cmpi eq, %7, %41 : vector<8x8xi32>
    %cst_34 = arith.constant -1.000000e+09 : f32
    %43 = vector.broadcast %cst_34 : f32 to vector<8x8xf32>
    %44 = arith.select %42, %43, %40 : vector<8x8xi1>, vector<8x8xf32>
    %cst_35 = arith.constant 0.353553385 : f32
    %45 = vector.broadcast %cst_35 : f32 to vector<8x8xf32>
    %46 = arith.mulf %44, %45 : vector<8x8xf32>
    %cst_36 = arith.constant dense<0xFF800000> : vector<8xf32>
    %47 = vector.multi_reduction <maximumf>, %46, %cst_36 [1] : vector<8x8xf32> to vector<8xf32>
    %48 = vector.shape_cast %47 : vector<8xf32> to vector<8x1xf32>
    %49 = vector.broadcast %48 : vector<8x1xf32> to vector<8x8xf32>
    %50 = arith.subf %46, %49 : vector<8x8xf32>
    %51 = math.exp %50 : vector<8x8xf32>
    %cst_37 = arith.constant dense<0.000000e+00> : vector<8xf32>
    %52 = vector.multi_reduction <add>, %51, %cst_37 [1] : vector<8x8xf32> to vector<8xf32>
    %53 = vector.shape_cast %52 : vector<8xf32> to vector<8x1xf32>
    %54 = arith.truncf %51 : vector<8x8xf32> to vector<8x8xbf16>
    %cst_38 = arith.constant dense<0.000000e+00> : vector<8x8xf32>
    %55 = tpu.matmul %54, %39, %cst_38 {dimension_numbers = #tpu.dot_dimension_numbers<[1], [0], [0], [1], [0, 0, 1, 1], [], []>} : vector<8x8xbf16>, vector<8x8xbf16>, vector<8x8xf32> -> vector<8x8xf32>
    %56 = tpu.reciprocal %53 {approx = true} : vector<8x1xf32> -> vector<8x1xf32>
    %57 = vector.broadcast %56 : vector<8x1xf32> to vector<8x8xf32>
    %58 = arith.mulf %55, %57 : vector<8x8xf32>
    %59 = vector.extract_strided_slice %25 {offsets = [0, 8], sizes = [8, 8], strides = [1, 1]} : vector<8x32xf32> to vector<8x8xf32>
    %60 = arith.truncf %59 : vector<8x8xf32> to vector<8x8xbf16>
    %61 = vector.extract_strided_slice %29 {offsets = [0, 8], sizes = [8, 8], strides = [1, 1]} : vector<8x32xf32> to vector<8x8xf32>
    %62 = arith.truncf %61 : vector<8x8xf32> to vector<8x8xbf16>
    %63 = vector.extract_strided_slice %33 {offsets = [0, 8], sizes = [8, 8], strides = [1, 1]} : vector<8x32xf32> to vector<8x8xf32>
    %64 = arith.truncf %63 : vector<8x8xf32> to vector<8x8xbf16>
    %cst_39 = arith.constant dense<0.000000e+00> : vector<8x8xf32>
    %65 = tpu.matmul %60, %62, %cst_39 {dimension_numbers = #tpu.dot_dimension_numbers<[1], [1], [0], [0], [0, 0, 1, 0], [], []>} : vector<8x8xbf16>, vector<8x8xbf16>, vector<8x8xf32> -> vector<8x8xf32>
    %c0_i32_40 = arith.constant 0 : i32
    %66 = vector.broadcast %c0_i32_40 : i32 to vector<8x8xi32>
    %67 = arith.cmpi eq, %7, %66 : vector<8x8xi32>
    %cst_41 = arith.constant -1.000000e+09 : f32
    %68 = vector.broadcast %cst_41 : f32 to vector<8x8xf32>
    %69 = arith.select %67, %68, %65 : vector<8x8xi1>, vector<8x8xf32>
    %cst_42 = arith.constant 0.353553385 : f32
    %70 = vector.broadcast %cst_42 : f32 to vector<8x8xf32>
    %71 = arith.mulf %69, %70 : vector<8x8xf32>
    %cst_43 = arith.constant dense<0xFF800000> : vector<8xf32>
    %72 = vector.multi_reduction <maximumf>, %71, %cst_43 [1] : vector<8x8xf32> to vector<8xf32>
    %73 = vector.shape_cast %72 : vector<8xf32> to vector<8x1xf32>
    %74 = vector.broadcast %73 : vector<8x1xf32> to vector<8x8xf32>
    %75 = arith.subf %71, %74 : vector<8x8xf32>
    %76 = math.exp %75 : vector<8x8xf32>
    %cst_44 = arith.constant dense<0.000000e+00> : vector<8xf32>
    %77 = vector.multi_reduction <add>, %76, %cst_44 [1] : vector<8x8xf32> to vector<8xf32>
    %78 = vector.shape_cast %77 : vector<8xf32> to vector<8x1xf32>
    %79 = arith.truncf %76 : vector<8x8xf32> to vector<8x8xbf16>
    %cst_45 = arith.constant dense<0.000000e+00> : vector<8x8xf32>
    %80 = tpu.matmul %79, %64, %cst_45 {dimension_numbers = #tpu.dot_dimension_numbers<[1], [0], [0], [1], [0, 0, 1, 1], [], []>} : vector<8x8xbf16>, vector<8x8xbf16>, vector<8x8xf32> -> vector<8x8xf32>
    %81 = tpu.reciprocal %78 {approx = true} : vector<8x1xf32> -> vector<8x1xf32>
    %82 = vector.broadcast %81 : vector<8x1xf32> to vector<8x8xf32>
    %83 = arith.mulf %80, %82 : vector<8x8xf32>
    %84 = vector.extract_strided_slice %25 {offsets = [0, 16], sizes = [8, 8], strides = [1, 1]} : vector<8x32xf32> to vector<8x8xf32>
    %85 = arith.truncf %84 : vector<8x8xf32> to vector<8x8xbf16>
    %86 = vector.extract_strided_slice %29 {offsets = [0, 16], sizes = [8, 8], strides = [1, 1]} : vector<8x32xf32> to vector<8x8xf32>
    %87 = arith.truncf %86 : vector<8x8xf32> to vector<8x8xbf16>
    %88 = vector.extract_strided_slice %33 {offsets = [0, 16], sizes = [8, 8], strides = [1, 1]} : vector<8x32xf32> to vector<8x8xf32>
    %89 = arith.truncf %88 : vector<8x8xf32> to vector<8x8xbf16>
    %cst_46 = arith.constant dense<0.000000e+00> : vector<8x8xf32>
    %90 = tpu.matmul %85, %87, %cst_46 {dimension_numbers = #tpu.dot_dimension_numbers<[1], [1], [0], [0], [0, 0, 1, 0], [], []>} : vector<8x8xbf16>, vector<8x8xbf16>, vector<8x8xf32> -> vector<8x8xf32>
    %c0_i32_47 = arith.constant 0 : i32
    %91 = vector.broadcast %c0_i32_47 : i32 to vector<8x8xi32>
    %92 = arith.cmpi eq, %7, %91 : vector<8x8xi32>
    %cst_48 = arith.constant -1.000000e+09 : f32
    %93 = vector.broadcast %cst_48 : f32 to vector<8x8xf32>
    %94 = arith.select %92, %93, %90 : vector<8x8xi1>, vector<8x8xf32>
    %cst_49 = arith.constant 0.353553385 : f32
    %95 = vector.broadcast %cst_49 : f32 to vector<8x8xf32>
    %96 = arith.mulf %94, %95 : vector<8x8xf32>
    %cst_50 = arith.constant dense<0xFF800000> : vector<8xf32>
    %97 = vector.multi_reduction <maximumf>, %96, %cst_50 [1] : vector<8x8xf32> to vector<8xf32>
    %98 = vector.shape_cast %97 : vector<8xf32> to vector<8x1xf32>
    %99 = vector.broadcast %98 : vector<8x1xf32> to vector<8x8xf32>
    %100 = arith.subf %96, %99 : vector<8x8xf32>
    %101 = math.exp %100 : vector<8x8xf32>
    %cst_51 = arith.constant dense<0.000000e+00> : vector<8xf32>
    %102 = vector.multi_reduction <add>, %101, %cst_51 [1] : vector<8x8xf32> to vector<8xf32>
    %103 = vector.shape_cast %102 : vector<8xf32> to vector<8x1xf32>
    %104 = arith.truncf %101 : vector<8x8xf32> to vector<8x8xbf16>
    %cst_52 = arith.constant dense<0.000000e+00> : vector<8x8xf32>
    %105 = tpu.matmul %104, %89, %cst_52 {dimension_numbers = #tpu.dot_dimension_numbers<[1], [0], [0], [1], [0, 0, 1, 1], [], []>} : vector<8x8xbf16>, vector<8x8xbf16>, vector<8x8xf32> -> vector<8x8xf32>
    %106 = tpu.reciprocal %103 {approx = true} : vector<8x1xf32> -> vector<8x1xf32>
    %107 = vector.broadcast %106 : vector<8x1xf32> to vector<8x8xf32>
    %108 = arith.mulf %105, %107 : vector<8x8xf32>
    %109 = vector.extract_strided_slice %25 {offsets = [0, 24], sizes = [8, 8], strides = [1, 1]} : vector<8x32xf32> to vector<8x8xf32>
    %110 = arith.truncf %109 : vector<8x8xf32> to vector<8x8xbf16>
    %111 = vector.extract_strided_slice %29 {offsets = [0, 24], sizes = [8, 8], strides = [1, 1]} : vector<8x32xf32> to vector<8x8xf32>
    %112 = arith.truncf %111 : vector<8x8xf32> to vector<8x8xbf16>
    %113 = vector.extract_strided_slice %33 {offsets = [0, 24], sizes = [8, 8], strides = [1, 1]} : vector<8x32xf32> to vector<8x8xf32>
    %114 = arith.truncf %113 : vector<8x8xf32> to vector<8x8xbf16>
    %cst_53 = arith.constant dense<0.000000e+00> : vector<8x8xf32>
    %115 = tpu.matmul %110, %112, %cst_53 {dimension_numbers = #tpu.dot_dimension_numbers<[1], [1], [0], [0], [0, 0, 1, 0], [], []>} : vector<8x8xbf16>, vector<8x8xbf16>, vector<8x8xf32> -> vector<8x8xf32>
    %c0_i32_54 = arith.constant 0 : i32
    %116 = vector.broadcast %c0_i32_54 : i32 to vector<8x8xi32>
    %117 = arith.cmpi eq, %7, %116 : vector<8x8xi32>
    %cst_55 = arith.constant -1.000000e+09 : f32
    %118 = vector.broadcast %cst_55 : f32 to vector<8x8xf32>
    %119 = arith.select %117, %118, %115 : vector<8x8xi1>, vector<8x8xf32>
    %cst_56 = arith.constant 0.353553385 : f32
    %120 = vector.broadcast %cst_56 : f32 to vector<8x8xf32>
    %121 = arith.mulf %119, %120 : vector<8x8xf32>
    %cst_57 = arith.constant dense<0xFF800000> : vector<8xf32>
    %122 = vector.multi_reduction <maximumf>, %121, %cst_57 [1] : vector<8x8xf32> to vector<8xf32>
    %123 = vector.shape_cast %122 : vector<8xf32> to vector<8x1xf32>
    %124 = vector.broadcast %123 : vector<8x1xf32> to vector<8x8xf32>
    %125 = arith.subf %121, %124 : vector<8x8xf32>
    %126 = math.exp %125 : vector<8x8xf32>
    %cst_58 = arith.constant dense<0.000000e+00> : vector<8xf32>
    %127 = vector.multi_reduction <add>, %126, %cst_58 [1] : vector<8x8xf32> to vector<8xf32>
    %128 = vector.shape_cast %127 : vector<8xf32> to vector<8x1xf32>
    %129 = arith.truncf %126 : vector<8x8xf32> to vector<8x8xbf16>
    %cst_59 = arith.constant dense<0.000000e+00> : vector<8x8xf32>
    %130 = tpu.matmul %129, %114, %cst_59 {dimension_numbers = #tpu.dot_dimension_numbers<[1], [0], [0], [1], [0, 0, 1, 1], [], []>} : vector<8x8xbf16>, vector<8x8xbf16>, vector<8x8xf32> -> vector<8x8xf32>
    %131 = tpu.reciprocal %128 {approx = true} : vector<8x1xf32> -> vector<8x1xf32>
    %132 = vector.broadcast %131 : vector<8x1xf32> to vector<8x8xf32>
    %133 = arith.mulf %130, %132 : vector<8x8xf32>
    %134 = tpu.concatenate %58, %83, %108, %133 in 1 : vector<8x8xf32>, vector<8x8xf32>, vector<8x8xf32>, vector<8x8xf32> -> vector<8x32xf32>
    %135 = arith.truncf %134 : vector<8x32xf32> to vector<8x32xbf16>
    %cst_60 = arith.constant dense<0.000000e+00> : vector<8x32xf32>
    %136 = tpu.matmul %135, %20, %cst_60 {dimension_numbers = #tpu.dot_dimension_numbers<[1], [0], [0], [1], [0, 0, 1, 1], [], []>} : vector<8x32xbf16>, vector<32x32xbf16>, vector<8x32xf32> -> vector<8x32xf32>
    %137 = vector.broadcast %21 : vector<1x32xf32> to vector<8x32xf32>
    %138 = arith.addf %136, %137 : vector<8x32xf32>
    %139 = arith.addf %1, %138 : vector<8x32xf32>
    %c4 = arith.constant 4 : index
    %c0_61 = arith.constant 0 : index
    %140 = vector.load %arg7[%c4, %c0_61] : memref<15x32xf32, #tpu.memory_space<vmem>>, vector<1x32xf32>
    %c5 = arith.constant 5 : index
    %c0_62 = arith.constant 0 : index
    %141 = vector.load %arg7[%c5, %c0_62] : memref<15x32xf32, #tpu.memory_space<vmem>>, vector<1x32xf32>
    %cst_63 = arith.constant dense<0.000000e+00> : vector<8xf32>
    %142 = vector.multi_reduction <add>, %139, %cst_63 [1] : vector<8x32xf32> to vector<8xf32>
    %143 = vector.shape_cast %142 : vector<8xf32> to vector<8x1xf32>
    %cst_64 = arith.constant 3.200000e+01 : f32
    %144 = vector.broadcast %cst_64 : f32 to vector<8x1xf32>
    %145 = arith.divf %143, %144 : vector<8x1xf32>
    %146 = vector.broadcast %145 : vector<8x1xf32> to vector<8x32xf32>
    %147 = arith.subf %139, %146 : vector<8x32xf32>
    %148 = arith.mulf %147, %147 : vector<8x32xf32>
    %cst_65 = arith.constant dense<0.000000e+00> : vector<8xf32>
    %149 = vector.multi_reduction <add>, %148, %cst_65 [1] : vector<8x32xf32> to vector<8xf32>
    %150 = vector.shape_cast %149 : vector<8xf32> to vector<8x1xf32>
    %cst_66 = arith.constant 3.200000e+01 : f32
    %151 = vector.broadcast %cst_66 : f32 to vector<8x1xf32>
    %152 = arith.divf %150, %151 : vector<8x1xf32>
    %cst_67 = arith.constant 9.99999974E-6 : f32
    %153 = vector.broadcast %cst_67 : f32 to vector<8x1xf32>
    %154 = arith.addf %152, %153 : vector<8x1xf32>
    %155 = math.rsqrt %154 : vector<8x1xf32>
    %156 = vector.broadcast %155 : vector<8x1xf32> to vector<8x32xf32>
    %157 = arith.mulf %147, %156 : vector<8x32xf32>
    %158 = vector.broadcast %140 : vector<1x32xf32> to vector<8x32xf32>
    %159 = arith.mulf %157, %158 : vector<8x32xf32>
    %160 = vector.broadcast %141 : vector<1x32xf32> to vector<8x32xf32>
    %161 = arith.addf %159, %160 : vector<8x32xf32>
    %c4_68 = arith.constant 4 : index
    %c0_69 = arith.constant 0 : index
    %c0_70 = arith.constant 0 : index
    %162 = vector.load %arg6[%c4_68, %c0_69, %c0_70] : memref<8x32x32xbf16, #tpu.memory_space<vmem>>, vector<1x32x32xbf16>
    %163 = vector.shape_cast %162 : vector<1x32x32xbf16> to vector<32x32xbf16>
    %c6 = arith.constant 6 : index
    %c0_71 = arith.constant 0 : index
    %164 = vector.load %arg7[%c6, %c0_71] : memref<15x32xf32, #tpu.memory_space<vmem>>, vector<1x32xf32>
    %c5_72 = arith.constant 5 : index
    %c0_73 = arith.constant 0 : index
    %c0_74 = arith.constant 0 : index
    %165 = vector.load %arg6[%c5_72, %c0_73, %c0_74] : memref<8x32x32xbf16, #tpu.memory_space<vmem>>, vector<1x32x32xbf16>
    %166 = vector.shape_cast %165 : vector<1x32x32xbf16> to vector<32x32xbf16>
    %c7 = arith.constant 7 : index
    %c0_75 = arith.constant 0 : index
    %167 = vector.load %arg7[%c7, %c0_75] : memref<15x32xf32, #tpu.memory_space<vmem>>, vector<1x32xf32>
    %c6_76 = arith.constant 6 : index
    %c0_77 = arith.constant 0 : index
    %c0_78 = arith.constant 0 : index
    %168 = vector.load %arg6[%c6_76, %c0_77, %c0_78] : memref<8x32x32xbf16, #tpu.memory_space<vmem>>, vector<1x32x32xbf16>
    %169 = vector.shape_cast %168 : vector<1x32x32xbf16> to vector<32x32xbf16>
    %c8 = arith.constant 8 : index
    %c0_79 = arith.constant 0 : index
    %170 = vector.load %arg7[%c8, %c0_79] : memref<15x32xf32, #tpu.memory_space<vmem>>, vector<1x32xf32>
    %c7_80 = arith.constant 7 : index
    %c0_81 = arith.constant 0 : index
    %c0_82 = arith.constant 0 : index
    %171 = vector.load %arg6[%c7_80, %c0_81, %c0_82] : memref<8x32x32xbf16, #tpu.memory_space<vmem>>, vector<1x32x32xbf16>
    %172 = vector.shape_cast %171 : vector<1x32x32xbf16> to vector<32x32xbf16>
    %c9 = arith.constant 9 : index
    %c0_83 = arith.constant 0 : index
    %173 = vector.load %arg7[%c9, %c0_83] : memref<15x32xf32, #tpu.memory_space<vmem>>, vector<1x32xf32>
    %174 = arith.truncf %161 : vector<8x32xf32> to vector<8x32xbf16>
    %cst_84 = arith.constant dense<0.000000e+00> : vector<8x32xf32>
    %175 = tpu.matmul %174, %163, %cst_84 {dimension_numbers = #tpu.dot_dimension_numbers<[1], [0], [0], [1], [0, 0, 1, 1], [], []>} : vector<8x32xbf16>, vector<32x32xbf16>, vector<8x32xf32> -> vector<8x32xf32>
    %176 = vector.broadcast %164 : vector<1x32xf32> to vector<8x32xf32>
    %177 = arith.addf %175, %176 : vector<8x32xf32>
    %178 = arith.truncf %5 : vector<8x32xf32> to vector<8x32xbf16>
    %cst_85 = arith.constant dense<0.000000e+00> : vector<8x32xf32>
    %179 = tpu.matmul %178, %166, %cst_85 {dimension_numbers = #tpu.dot_dimension_numbers<[1], [0], [0], [1], [0, 0, 1, 1], [], []>} : vector<8x32xbf16>, vector<32x32xbf16>, vector<8x32xf32> -> vector<8x32xf32>
    %180 = vector.broadcast %167 : vector<1x32xf32> to vector<8x32xf32>
    %181 = arith.addf %179, %180 : vector<8x32xf32>
    %182 = arith.truncf %3 : vector<8x32xf32> to vector<8x32xbf16>
    %cst_86 = arith.constant dense<0.000000e+00> : vector<8x32xf32>
    %183 = tpu.matmul %182, %169, %cst_86 {dimension_numbers = #tpu.dot_dimension_numbers<[1], [0], [0], [1], [0, 0, 1, 1], [], []>} : vector<8x32xbf16>, vector<32x32xbf16>, vector<8x32xf32> -> vector<8x32xf32>
    %184 = vector.broadcast %170 : vector<1x32xf32> to vector<8x32xf32>
    %185 = arith.addf %183, %184 : vector<8x32xf32>
    %186 = vector.extract_strided_slice %177 {offsets = [0, 0], sizes = [8, 8], strides = [1, 1]} : vector<8x32xf32> to vector<8x8xf32>
    %187 = arith.truncf %186 : vector<8x8xf32> to vector<8x8xbf16>
    %188 = vector.extract_strided_slice %181 {offsets = [0, 0], sizes = [8, 8], strides = [1, 1]} : vector<8x32xf32> to vector<8x8xf32>
    %189 = arith.truncf %188 : vector<8x8xf32> to vector<8x8xbf16>
    %190 = vector.extract_strided_slice %185 {offsets = [0, 0], sizes = [8, 8], strides = [1, 1]} : vector<8x32xf32> to vector<8x8xf32>
    %191 = arith.truncf %190 : vector<8x8xf32> to vector<8x8xbf16>
    %cst_87 = arith.constant dense<0.000000e+00> : vector<8x8xf32>
    %192 = tpu.matmul %187, %189, %cst_87 {dimension_numbers = #tpu.dot_dimension_numbers<[1], [1], [0], [0], [0, 0, 1, 0], [], []>} : vector<8x8xbf16>, vector<8x8xbf16>, vector<8x8xf32> -> vector<8x8xf32>
    %c0_i32_88 = arith.constant 0 : i32
    %193 = vector.broadcast %c0_i32_88 : i32 to vector<8x8xi32>
    %194 = arith.cmpi eq, %9, %193 : vector<8x8xi32>
    %cst_89 = arith.constant -1.000000e+09 : f32
    %195 = vector.broadcast %cst_89 : f32 to vector<8x8xf32>
    %196 = arith.select %194, %195, %192 : vector<8x8xi1>, vector<8x8xf32>
    %cst_90 = arith.constant 0.353553385 : f32
    %197 = vector.broadcast %cst_90 : f32 to vector<8x8xf32>
    %198 = arith.mulf %196, %197 : vector<8x8xf32>
    %cst_91 = arith.constant dense<0xFF800000> : vector<8xf32>
    %199 = vector.multi_reduction <maximumf>, %198, %cst_91 [1] : vector<8x8xf32> to vector<8xf32>
    %200 = vector.shape_cast %199 : vector<8xf32> to vector<8x1xf32>
    %201 = vector.broadcast %200 : vector<8x1xf32> to vector<8x8xf32>
    %202 = arith.subf %198, %201 : vector<8x8xf32>
    %203 = math.exp %202 : vector<8x8xf32>
    %cst_92 = arith.constant dense<0.000000e+00> : vector<8xf32>
    %204 = vector.multi_reduction <add>, %203, %cst_92 [1] : vector<8x8xf32> to vector<8xf32>
    %205 = vector.shape_cast %204 : vector<8xf32> to vector<8x1xf32>
    %206 = arith.truncf %203 : vector<8x8xf32> to vector<8x8xbf16>
    %cst_93 = arith.constant dense<0.000000e+00> : vector<8x8xf32>
    %207 = tpu.matmul %206, %191, %cst_93 {dimension_numbers = #tpu.dot_dimension_numbers<[1], [0], [0], [1], [0, 0, 1, 1], [], []>} : vector<8x8xbf16>, vector<8x8xbf16>, vector<8x8xf32> -> vector<8x8xf32>
    %208 = tpu.reciprocal %205 {approx = true} : vector<8x1xf32> -> vector<8x1xf32>
    %209 = vector.broadcast %208 : vector<8x1xf32> to vector<8x8xf32>
    %210 = arith.mulf %207, %209 : vector<8x8xf32>
    %211 = vector.extract_strided_slice %177 {offsets = [0, 8], sizes = [8, 8], strides = [1, 1]} : vector<8x32xf32> to vector<8x8xf32>
    %212 = arith.truncf %211 : vector<8x8xf32> to vector<8x8xbf16>
    %213 = vector.extract_strided_slice %181 {offsets = [0, 8], sizes = [8, 8], strides = [1, 1]} : vector<8x32xf32> to vector<8x8xf32>
    %214 = arith.truncf %213 : vector<8x8xf32> to vector<8x8xbf16>
    %215 = vector.extract_strided_slice %185 {offsets = [0, 8], sizes = [8, 8], strides = [1, 1]} : vector<8x32xf32> to vector<8x8xf32>
    %216 = arith.truncf %215 : vector<8x8xf32> to vector<8x8xbf16>
    %cst_94 = arith.constant dense<0.000000e+00> : vector<8x8xf32>
    %217 = tpu.matmul %212, %214, %cst_94 {dimension_numbers = #tpu.dot_dimension_numbers<[1], [1], [0], [0], [0, 0, 1, 0], [], []>} : vector<8x8xbf16>, vector<8x8xbf16>, vector<8x8xf32> -> vector<8x8xf32>
    %c0_i32_95 = arith.constant 0 : i32
    %218 = vector.broadcast %c0_i32_95 : i32 to vector<8x8xi32>
    %219 = arith.cmpi eq, %9, %218 : vector<8x8xi32>
    %cst_96 = arith.constant -1.000000e+09 : f32
    %220 = vector.broadcast %cst_96 : f32 to vector<8x8xf32>
    %221 = arith.select %219, %220, %217 : vector<8x8xi1>, vector<8x8xf32>
    %cst_97 = arith.constant 0.353553385 : f32
    %222 = vector.broadcast %cst_97 : f32 to vector<8x8xf32>
    %223 = arith.mulf %221, %222 : vector<8x8xf32>
    %cst_98 = arith.constant dense<0xFF800000> : vector<8xf32>
    %224 = vector.multi_reduction <maximumf>, %223, %cst_98 [1] : vector<8x8xf32> to vector<8xf32>
    %225 = vector.shape_cast %224 : vector<8xf32> to vector<8x1xf32>
    %226 = vector.broadcast %225 : vector<8x1xf32> to vector<8x8xf32>
    %227 = arith.subf %223, %226 : vector<8x8xf32>
    %228 = math.exp %227 : vector<8x8xf32>
    %cst_99 = arith.constant dense<0.000000e+00> : vector<8xf32>
    %229 = vector.multi_reduction <add>, %228, %cst_99 [1] : vector<8x8xf32> to vector<8xf32>
    %230 = vector.shape_cast %229 : vector<8xf32> to vector<8x1xf32>
    %231 = arith.truncf %228 : vector<8x8xf32> to vector<8x8xbf16>
    %cst_100 = arith.constant dense<0.000000e+00> : vector<8x8xf32>
    %232 = tpu.matmul %231, %216, %cst_100 {dimension_numbers = #tpu.dot_dimension_numbers<[1], [0], [0], [1], [0, 0, 1, 1], [], []>} : vector<8x8xbf16>, vector<8x8xbf16>, vector<8x8xf32> -> vector<8x8xf32>
    %233 = tpu.reciprocal %230 {approx = true} : vector<8x1xf32> -> vector<8x1xf32>
    %234 = vector.broadcast %233 : vector<8x1xf32> to vector<8x8xf32>
    %235 = arith.mulf %232, %234 : vector<8x8xf32>
    %236 = vector.extract_strided_slice %177 {offsets = [0, 16], sizes = [8, 8], strides = [1, 1]} : vector<8x32xf32> to vector<8x8xf32>
    %237 = arith.truncf %236 : vector<8x8xf32> to vector<8x8xbf16>
    %238 = vector.extract_strided_slice %181 {offsets = [0, 16], sizes = [8, 8], strides = [1, 1]} : vector<8x32xf32> to vector<8x8xf32>
    %239 = arith.truncf %238 : vector<8x8xf32> to vector<8x8xbf16>
    %240 = vector.extract_strided_slice %185 {offsets = [0, 16], sizes = [8, 8], strides = [1, 1]} : vector<8x32xf32> to vector<8x8xf32>
    %241 = arith.truncf %240 : vector<8x8xf32> to vector<8x8xbf16>
    %cst_101 = arith.constant dense<0.000000e+00> : vector<8x8xf32>
    %242 = tpu.matmul %237, %239, %cst_101 {dimension_numbers = #tpu.dot_dimension_numbers<[1], [1], [0], [0], [0, 0, 1, 0], [], []>} : vector<8x8xbf16>, vector<8x8xbf16>, vector<8x8xf32> -> vector<8x8xf32>
    %c0_i32_102 = arith.constant 0 : i32
    %243 = vector.broadcast %c0_i32_102 : i32 to vector<8x8xi32>
    %244 = arith.cmpi eq, %9, %243 : vector<8x8xi32>
    %cst_103 = arith.constant -1.000000e+09 : f32
    %245 = vector.broadcast %cst_103 : f32 to vector<8x8xf32>
    %246 = arith.select %244, %245, %242 : vector<8x8xi1>, vector<8x8xf32>
    %cst_104 = arith.constant 0.353553385 : f32
    %247 = vector.broadcast %cst_104 : f32 to vector<8x8xf32>
    %248 = arith.mulf %246, %247 : vector<8x8xf32>
    %cst_105 = arith.constant dense<0xFF800000> : vector<8xf32>
    %249 = vector.multi_reduction <maximumf>, %248, %cst_105 [1] : vector<8x8xf32> to vector<8xf32>
    %250 = vector.shape_cast %249 : vector<8xf32> to vector<8x1xf32>
    %251 = vector.broadcast %250 : vector<8x1xf32> to vector<8x8xf32>
    %252 = arith.subf %248, %251 : vector<8x8xf32>
    %253 = math.exp %252 : vector<8x8xf32>
    %cst_106 = arith.constant dense<0.000000e+00> : vector<8xf32>
    %254 = vector.multi_reduction <add>, %253, %cst_106 [1] : vector<8x8xf32> to vector<8xf32>
    %255 = vector.shape_cast %254 : vector<8xf32> to vector<8x1xf32>
    %256 = arith.truncf %253 : vector<8x8xf32> to vector<8x8xbf16>
    %cst_107 = arith.constant dense<0.000000e+00> : vector<8x8xf32>
    %257 = tpu.matmul %256, %241, %cst_107 {dimension_numbers = #tpu.dot_dimension_numbers<[1], [0], [0], [1], [0, 0, 1, 1], [], []>} : vector<8x8xbf16>, vector<8x8xbf16>, vector<8x8xf32> -> vector<8x8xf32>
    %258 = tpu.reciprocal %255 {approx = true} : vector<8x1xf32> -> vector<8x1xf32>
    %259 = vector.broadcast %258 : vector<8x1xf32> to vector<8x8xf32>
    %260 = arith.mulf %257, %259 : vector<8x8xf32>
    %261 = vector.extract_strided_slice %177 {offsets = [0, 24], sizes = [8, 8], strides = [1, 1]} : vector<8x32xf32> to vector<8x8xf32>
    %262 = arith.truncf %261 : vector<8x8xf32> to vector<8x8xbf16>
    %263 = vector.extract_strided_slice %181 {offsets = [0, 24], sizes = [8, 8], strides = [1, 1]} : vector<8x32xf32> to vector<8x8xf32>
    %264 = arith.truncf %263 : vector<8x8xf32> to vector<8x8xbf16>
    %265 = vector.extract_strided_slice %185 {offsets = [0, 24], sizes = [8, 8], strides = [1, 1]} : vector<8x32xf32> to vector<8x8xf32>
    %266 = arith.truncf %265 : vector<8x8xf32> to vector<8x8xbf16>
    %cst_108 = arith.constant dense<0.000000e+00> : vector<8x8xf32>
    %267 = tpu.matmul %262, %264, %cst_108 {dimension_numbers = #tpu.dot_dimension_numbers<[1], [1], [0], [0], [0, 0, 1, 0], [], []>} : vector<8x8xbf16>, vector<8x8xbf16>, vector<8x8xf32> -> vector<8x8xf32>
    %c0_i32_109 = arith.constant 0 : i32
    %268 = vector.broadcast %c0_i32_109 : i32 to vector<8x8xi32>
    %269 = arith.cmpi eq, %9, %268 : vector<8x8xi32>
    %cst_110 = arith.constant -1.000000e+09 : f32
    %270 = vector.broadcast %cst_110 : f32 to vector<8x8xf32>
    %271 = arith.select %269, %270, %267 : vector<8x8xi1>, vector<8x8xf32>
    %cst_111 = arith.constant 0.353553385 : f32
    %272 = vector.broadcast %cst_111 : f32 to vector<8x8xf32>
    %273 = arith.mulf %271, %272 : vector<8x8xf32>
    %cst_112 = arith.constant dense<0xFF800000> : vector<8xf32>
    %274 = vector.multi_reduction <maximumf>, %273, %cst_112 [1] : vector<8x8xf32> to vector<8xf32>
    %275 = vector.shape_cast %274 : vector<8xf32> to vector<8x1xf32>
    %276 = vector.broadcast %275 : vector<8x1xf32> to vector<8x8xf32>
    %277 = arith.subf %273, %276 : vector<8x8xf32>
    %278 = math.exp %277 : vector<8x8xf32>
    %cst_113 = arith.constant dense<0.000000e+00> : vector<8xf32>
    %279 = vector.multi_reduction <add>, %278, %cst_113 [1] : vector<8x8xf32> to vector<8xf32>
    %280 = vector.shape_cast %279 : vector<8xf32> to vector<8x1xf32>
    %281 = arith.truncf %278 : vector<8x8xf32> to vector<8x8xbf16>
    %cst_114 = arith.constant dense<0.000000e+00> : vector<8x8xf32>
    %282 = tpu.matmul %281, %266, %cst_114 {dimension_numbers = #tpu.dot_dimension_numbers<[1], [0], [0], [1], [0, 0, 1, 1], [], []>} : vector<8x8xbf16>, vector<8x8xbf16>, vector<8x8xf32> -> vector<8x8xf32>
    %283 = tpu.reciprocal %280 {approx = true} : vector<8x1xf32> -> vector<8x1xf32>
    %284 = vector.broadcast %283 : vector<8x1xf32> to vector<8x8xf32>
    %285 = arith.mulf %282, %284 : vector<8x8xf32>
    %286 = tpu.concatenate %210, %235, %260, %285 in 1 : vector<8x8xf32>, vector<8x8xf32>, vector<8x8xf32>, vector<8x8xf32> -> vector<8x32xf32>
    %287 = arith.truncf %286 : vector<8x32xf32> to vector<8x32xbf16>
    %cst_115 = arith.constant dense<0.000000e+00> : vector<8x32xf32>
    %288 = tpu.matmul %287, %172, %cst_115 {dimension_numbers = #tpu.dot_dimension_numbers<[1], [0], [0], [1], [0, 0, 1, 1], [], []>} : vector<8x32xbf16>, vector<32x32xbf16>, vector<8x32xf32> -> vector<8x32xf32>
    %289 = vector.broadcast %173 : vector<1x32xf32> to vector<8x32xf32>
    %290 = arith.addf %288, %289 : vector<8x32xf32>
    %291 = arith.addf %161, %290 : vector<8x32xf32>
    %c10 = arith.constant 10 : index
    %c0_116 = arith.constant 0 : index
    %292 = vector.load %arg7[%c10, %c0_116] : memref<15x32xf32, #tpu.memory_space<vmem>>, vector<1x32xf32>
    %c11 = arith.constant 11 : index
    %c0_117 = arith.constant 0 : index
    %293 = vector.load %arg7[%c11, %c0_117] : memref<15x32xf32, #tpu.memory_space<vmem>>, vector<1x32xf32>
    %cst_118 = arith.constant dense<0.000000e+00> : vector<8xf32>
    %294 = vector.multi_reduction <add>, %291, %cst_118 [1] : vector<8x32xf32> to vector<8xf32>
    %295 = vector.shape_cast %294 : vector<8xf32> to vector<8x1xf32>
    %cst_119 = arith.constant 3.200000e+01 : f32
    %296 = vector.broadcast %cst_119 : f32 to vector<8x1xf32>
    %297 = arith.divf %295, %296 : vector<8x1xf32>
    %298 = vector.broadcast %297 : vector<8x1xf32> to vector<8x32xf32>
    %299 = arith.subf %291, %298 : vector<8x32xf32>
    %300 = arith.mulf %299, %299 : vector<8x32xf32>
    %cst_120 = arith.constant dense<0.000000e+00> : vector<8xf32>
    %301 = vector.multi_reduction <add>, %300, %cst_120 [1] : vector<8x32xf32> to vector<8xf32>
    %302 = vector.shape_cast %301 : vector<8xf32> to vector<8x1xf32>
    %cst_121 = arith.constant 3.200000e+01 : f32
    %303 = vector.broadcast %cst_121 : f32 to vector<8x1xf32>
    %304 = arith.divf %302, %303 : vector<8x1xf32>
    %cst_122 = arith.constant 9.99999974E-6 : f32
    %305 = vector.broadcast %cst_122 : f32 to vector<8x1xf32>
    %306 = arith.addf %304, %305 : vector<8x1xf32>
    %307 = math.rsqrt %306 : vector<8x1xf32>
    %308 = vector.broadcast %307 : vector<8x1xf32> to vector<8x32xf32>
    %309 = arith.mulf %299, %308 : vector<8x32xf32>
    %310 = vector.broadcast %292 : vector<1x32xf32> to vector<8x32xf32>
    %311 = arith.mulf %309, %310 : vector<8x32xf32>
    %312 = vector.broadcast %293 : vector<1x32xf32> to vector<8x32xf32>
    %313 = arith.addf %311, %312 : vector<8x32xf32>
    %314 = arith.truncf %313 : vector<8x32xf32> to vector<8x32xbf16>
    %c0_123 = arith.constant 0 : index
    %c0_124 = arith.constant 0 : index
    %315 = vector.load %arg8[%c0_123, %c0_124] : memref<32x64xbf16, #tpu.memory_space<vmem>>, vector<32x64xbf16>
    %cst_125 = arith.constant dense<0.000000e+00> : vector<8x64xf32>
    %316 = tpu.matmul %314, %315, %cst_125 {dimension_numbers = #tpu.dot_dimension_numbers<[1], [0], [0], [1], [0, 0, 1, 1], [], []>} : vector<8x32xbf16>, vector<32x64xbf16>, vector<8x64xf32> -> vector<8x64xf32>
    %c0_126 = arith.constant 0 : index
    %c0_127 = arith.constant 0 : index
    %317 = vector.load %arg9[%c0_126, %c0_127] : memref<1x64xf32, #tpu.memory_space<vmem>>, vector<1x64xf32>
    %318 = vector.broadcast %317 : vector<1x64xf32> to vector<8x64xf32>
    %319 = arith.addf %316, %318 : vector<8x64xf32>
    %cst_128 = arith.constant 0.000000e+00 : f32
    %320 = vector.broadcast %cst_128 : f32 to vector<8x64xf32>
    %321 = arith.maximumf %319, %320 : vector<8x64xf32>
    %322 = arith.truncf %321 : vector<8x64xf32> to vector<8x64xbf16>
    %c0_129 = arith.constant 0 : index
    %c0_130 = arith.constant 0 : index
    %323 = vector.load %arg10[%c0_129, %c0_130] : memref<64x32xbf16, #tpu.memory_space<vmem>>, vector<64x32xbf16>
    %cst_131 = arith.constant dense<0.000000e+00> : vector<8x32xf32>
    %324 = tpu.matmul %322, %323, %cst_131 {dimension_numbers = #tpu.dot_dimension_numbers<[1], [0], [0], [1], [0, 0, 1, 1], [], []>} : vector<8x64xbf16>, vector<64x32xbf16>, vector<8x32xf32> -> vector<8x32xf32>
    %c12 = arith.constant 12 : index
    %c0_132 = arith.constant 0 : index
    %325 = vector.load %arg7[%c12, %c0_132] : memref<15x32xf32, #tpu.memory_space<vmem>>, vector<1x32xf32>
    %326 = vector.broadcast %325 : vector<1x32xf32> to vector<8x32xf32>
    %327 = arith.addf %324, %326 : vector<8x32xf32>
    %328 = arith.addf %313, %327 : vector<8x32xf32>
    %c13 = arith.constant 13 : index
    %c0_133 = arith.constant 0 : index
    %329 = vector.load %arg7[%c13, %c0_133] : memref<15x32xf32, #tpu.memory_space<vmem>>, vector<1x32xf32>
    %c14 = arith.constant 14 : index
    %c0_134 = arith.constant 0 : index
    %330 = vector.load %arg7[%c14, %c0_134] : memref<15x32xf32, #tpu.memory_space<vmem>>, vector<1x32xf32>
    %cst_135 = arith.constant dense<0.000000e+00> : vector<8xf32>
    %331 = vector.multi_reduction <add>, %328, %cst_135 [1] : vector<8x32xf32> to vector<8xf32>
    %332 = vector.shape_cast %331 : vector<8xf32> to vector<8x1xf32>
    %cst_136 = arith.constant 3.200000e+01 : f32
    %333 = vector.broadcast %cst_136 : f32 to vector<8x1xf32>
    %334 = arith.divf %332, %333 : vector<8x1xf32>
    %335 = vector.broadcast %334 : vector<8x1xf32> to vector<8x32xf32>
    %336 = arith.subf %328, %335 : vector<8x32xf32>
    %337 = arith.mulf %336, %336 : vector<8x32xf32>
    %cst_137 = arith.constant dense<0.000000e+00> : vector<8xf32>
    %338 = vector.multi_reduction <add>, %337, %cst_137 [1] : vector<8x32xf32> to vector<8xf32>
    %339 = vector.shape_cast %338 : vector<8xf32> to vector<8x1xf32>
    %cst_138 = arith.constant 3.200000e+01 : f32
    %340 = vector.broadcast %cst_138 : f32 to vector<8x1xf32>
    %341 = arith.divf %339, %340 : vector<8x1xf32>
    %cst_139 = arith.constant 9.99999974E-6 : f32
    %342 = vector.broadcast %cst_139 : f32 to vector<8x1xf32>
    %343 = arith.addf %341, %342 : vector<8x1xf32>
    %344 = math.rsqrt %343 : vector<8x1xf32>
    %345 = vector.broadcast %344 : vector<8x1xf32> to vector<8x32xf32>
    %346 = arith.mulf %336, %345 : vector<8x32xf32>
    %347 = vector.broadcast %329 : vector<1x32xf32> to vector<8x32xf32>
    %348 = arith.mulf %346, %347 : vector<8x32xf32>
    %349 = vector.broadcast %330 : vector<1x32xf32> to vector<8x32xf32>
    %350 = arith.addf %348, %349 : vector<8x32xf32>
    %c0_140 = arith.constant 0 : index
    %c0_141 = arith.constant 0 : index
    %c0_142 = arith.constant 0 : index
    %351 = vector.load %arg11[%c0_140, %c0_141, %c0_142] : memref<1x8x32xf32, #tpu.memory_space<vmem>>, vector<1x8x32xf32>
    %352 = vector.shape_cast %351 : vector<1x8x32xf32> to vector<8x32xf32>
    %353 = vector.shape_cast %350 : vector<8x32xf32> to vector<1x8x32xf32>
    tpu.vector_store %arg11[%c0_140, %c0_141, %c0_142], %353 {strides = array<i32>} : memref<1x8x32xf32, #tpu.memory_space<vmem>>, vector<1x8x32xf32>,
    return
  }
  func.func @transform_0(%arg0: i32) -> (i32, i32, i32) {
    %c0_i32 = arith.constant 0 : i32
    %c0_i32_0 = arith.constant 0 : i32
    %c0_i32_1 = arith.constant 0 : i32
    return %arg0, %c0_i32, %c0_i32_0 : i32, i32, i32
  }
  func.func @transform_1(%arg0: i32) -> (i32, i32, i32) {
    %c0_i32 = arith.constant 0 : i32
    %c0_i32_0 = arith.constant 0 : i32
    %c0_i32_1 = arith.constant 0 : i32
    return %arg0, %c0_i32, %c0_i32_0 : i32, i32, i32
  }
  func.func @transform_2(%arg0: i32) -> (i32, i32, i32) {
    %c0_i32 = arith.constant 0 : i32
    %c0_i32_0 = arith.constant 0 : i32
    %c0_i32_1 = arith.constant 0 : i32
    return %arg0, %c0_i32, %c0_i32_0 : i32, i32, i32
  }
  func.func @transform_3(%arg0: i32) -> (i32, i32, i32) {
    %c0_i32 = arith.constant 0 : i32
    %c0_i32_0 = arith.constant 0 : i32
    %c0_i32_1 = arith.constant 0 : i32
    return %arg0, %c0_i32, %c0_i32_0 : i32, i32, i32
  }
  func.func @transform_4(%arg0: i32) -> (i32, i32, i32) {
    %c0_i32 = arith.constant 0 : i32
    %c0_i32_0 = arith.constant 0 : i32
    %c0_i32_1 = arith.constant 0 : i32
    return %arg0, %c0_i32, %c0_i32_0 : i32, i32, i32
  }
  func.func @transform_5(%arg0: i32) -> (i32, i32, i32) {
    %c0_i32 = arith.constant 0 : i32
    %c0_i32_0 = arith.constant 0 : i32
    %c0_i32_1 = arith.constant 0 : i32
    %c0_i32_2 = arith.constant 0 : i32
    return %c0_i32, %c0_i32_0, %c0_i32_1 : i32, i32, i32
  }
  func.func @transform_6(%arg0: i32) -> (i32, i32) {
    %c0_i32 = arith.constant 0 : i32
    %c0_i32_0 = arith.constant 0 : i32
    %c0_i32_1 = arith.constant 0 : i32
    return %c0_i32, %c0_i32_0 : i32, i32
  }
  func.func @transform_7(%arg0: i32) -> (i32, i32) {
    %c0_i32 = arith.constant 0 : i32
    %c0_i32_0 = arith.constant 0 : i32
    %c0_i32_1 = arith.constant 0 : i32
    return %c0_i32, %c0_i32_0 : i32, i32
  }
  func.func @transform_8(%arg0: i32) -> (i32, i32) {
    %c0_i32 = arith.constant 0 : i32
    %c0_i32_0 = arith.constant 0 : i32
    %c0_i32_1 = arith.constant 0 : i32
    return %c0_i32, %c0_i32_0 : i32, i32
  }
  func.func @transform_9(%arg0: i32) -> (i32, i32) {
    %c0_i32 = arith.constant 0 : i32
    %c0_i32_0 = arith.constant 0 : i32
    %c0_i32_1 = arith.constant 0 : i32
    return %c0_i32, %c0_i32_0 : i32, i32
  }
  func.func @transform_10(%arg0: i32) -> (i32, i32, i32) {
    %c0_i32 = arith.constant 0 : i32
    %c0_i32_0 = arith.constant 0 : i32
    %c0_i32_1 = arith.constant 0 : i32
    return %arg0, %c0_i32, %c0_i32_0 : i32, i32, i32
  }
}

</mosaic_0001>

<llo_original>
// kernel: tpu_custom_call.1
$region0: #{tpu_custom_call.1}
  #allocation0 [shape = 'u32[]', space=smem, size = 0x4, offset = 0x4, fixed_abs, tag = 'smem constant byte address 0x4 - core index']
  #allocation1 [shape = 'u32[144,128]{1,0:T(1,128)}', space=vmem, size = 0x12000, scoped, tag = 'internal scratch']
  %s0 = inlined_call_operand.vmem [shape: f32[2,8,32], index: 0, kind: input, shape index: {}]
  %s1 = inlined_call_operand.vmem [shape: f32[2,8,32], index: 1, kind: input, shape index: {}]
  %s2 = inlined_call_operand.vmem [shape: f32[2,8,32], index: 2, kind: input, shape index: {}]
  %s3 = inlined_call_operand.hbm [shape: s32[2,8,8], index: 3, kind: input, shape index: {}]
  %s4 = inlined_call_operand.hbm [shape: s32[2,8,8], index: 4, kind: input, shape index: {}]
  %s5 = inlined_call_operand.hbm [shape: bf16[8,32,32], index: 5, kind: input, shape index: {}]
  %s6 = inlined_call_operand.hbm [shape: f32[15,32], index: 6, kind: input, shape index: {}]
  %s7 = inlined_call_operand.hbm [shape: bf16[32,64], index: 7, kind: input, shape index: {}]
  %s8 = inlined_call_operand.vmem [shape: f32[1,64], index: 8, kind: input, shape index: {}]
  %s9 = inlined_call_operand.vmem [shape: bf16[64,32], index: 9, kind: input, shape index: {}]
  %s10 = inlined_call_operand.hbm [shape: f32[2,8,32], index: 10, kind: output, shape index: {}]
  %s11 = sld [smem:[#allocation0]]
  $region93: #{tpu_custom_call.1} parent=0
    _
  %s13 = ssub.s32 1, %s11
  %s14 = scalar_select 0, %s13, %s11
  $region1: #{tpu_custom_call.1} parent=0
    #allocation2 [shape = 'u8[8192]{0}', space=vmem, size = 0x2000, scoped, tag = 'input window, operand 3']
    #allocation3 [shape = 's32[2]{0}', space=sflag, size = 0x8, scoped, tag = 'scoped memory for tpu_custom_call.1']
    #allocation4 [shape = 's32[2]{0}', space=sflag, size = 0x8, scoped, tag = 'scoped memory for tpu_custom_call.1']
    #allocation5 [shape = 'u8[8192]{0}', space=vmem, size = 0x2000, scoped, tag = 'input window, operand 4']
    #allocation6 [shape = 's32[2]{0}', space=sflag, size = 0x8, scoped, tag = 'scoped memory for tpu_custom_call.1']
    #allocation7 [shape = 'u8[65536]{0}', space=vmem, size = 0x10000, scoped, tag = 'input window, operand 5, single buffered']
    #allocation8 [shape = 'u8[8192]{0}', space=vmem, size = 0x2000, scoped, tag = 'input window, operand 6, single buffered']
    #allocation9 [shape = 's32[1]{0}', space=sflag, size = 0x4, scoped, tag = 'scoped memory for tpu_custom_call.1']
    #allocation10 [shape = 'u8[8192]{0}', space=vmem, size = 0x2000, scoped, tag = 'input window, operand 7, single buffered']
    #allocation11 [shape = 'u8[8192]{0}', space=vmem, size = 0x2000, scoped, tag = 'output window, operand 0']
    %15 = vsyncpa [#allocation3], 0
    %s16 = scalar_lea.sflag [#allocation3], 1
    %17 = vsyncpa %s16, 0
    %18 = vsyncpa [#allocation6], 0
    %s19 = scalar_lea.sflag [#allocation6], 1
    %20 = vsyncpa %s19, 0
    %21 = vsyncpa [#allocation9], 0
    %22 = vsyncpa [#allocation4], 0
    %s23 = scalar_lea.sflag [#allocation4], 1
    %24 = vsyncpa %s23, 0
    loop: start=0, step=1, limit=4
    $region2: #{tpu_custom_call.1} parent=1 // loop_pre_header
      _
    $region3: #{tpu_custom_call.1} parent=1 // loop_header
      %s26 = sphi 0, %s30
      %p27 = scmp.ge.s32.totalorder %s26, 4
      %s36 = sphi 0, %s38
      %s39 = sphi 0, %s36
      %s40 = sphi 0, %s39
      %s56 = sphi 0, %s40
      %s62 = sphi 0, %s64
      %s65 = sphi 0, %s62
      %s66 = sphi 0, %s65
      %s82 = sphi 0, %s66
      %s88 = sphi 0, %s90
      %s91 = sphi 0, %s88
      %s92 = sphi 0, %s91
      %s108 = sphi 0, %s92
      %s114 = sphi 0, %s116
      %s117 = sphi 0, %s114
      %s118 = sphi 0, %s117
      %s134 = sphi 0, %s118
      %s140 = sphi 0, %s142
      %s143 = sphi 0, %s140
      %s144 = sphi 0, %s143
      %s160 = sphi 0, %s144
      %s164 = sphi 0, %s164
      %s166 = sphi 0, %s164
      %s167 = sphi 0, %s166
      %s181 = sphi 0, %s167
      %s185 = sphi 0, %s185
      %s187 = sphi 0, %s185
      %s188 = sphi 0, %s187
      %s202 = sphi 0, %s188
      %s206 = sphi 0, %s206
      %s208 = sphi 0, %s206
      %s209 = sphi 0, %s208
      %s223 = sphi 0, %s209
      %s227 = sphi 0, %s227
      %s229 = sphi 0, %s227
      %s230 = sphi 0, %s229
      %s244 = sphi 0, %s230
      %s248 = sphi 0, %s248
      %s250 = sphi 0, %s248
      %s251 = sphi 0, %s250
      %s265 = sphi 0, %s251
      %s271 = sphi 0, %s273
      %s274 = sphi 0, %s271
      %s275 = sphi 0, %s274
      %s291 = sphi 0, %s275
    $region4: #{tpu_custom_call.1} parent=1 // loop_header_branch
      %29 = sbr.rel (%p27) target = $region8
    $region5: #{tpu_custom_call.1} parent=1 // loop_body
      %s31 = ssub.s32 %s26, 1
      %s32 = ssub.s32 %s26, 2
      %s33 = sadd.s32 %s26, 1
      %s34 = ssub.s32 %s26, %s33
      %p35 = scmp.eq.s32.totalorder %s34, 0
      %s37 = sadd.s32 %s36, 1
      %s38 = scalar_select %p35, %s36, %s37
      %p41 = pneg %p35
      %p42 = scmp.eq.s32.totalorder %s26, 1
      %p43 = por %p41, %p42
      %p44 = scmp.ne.s32.totalorder %s36, %s39
      %p45 = scmp.eq.s32.totalorder %s26, 0
      %p46 = por %p44, %p45
      %p47 = scmp.ne.s32.totalorder %s36, %s39
      %p48 = scmp.eq.s32.totalorder %s31, 1
      %p49 = por %p47, %p48
      %p50 = scmp.ne.s32.totalorder %s39, %s40
      %p51 = scmp.eq.s32.totalorder %s31, 0
      %p52 = por %p50, %p51
      %p53 = scmp.ne.s32.totalorder %s39, %s40
      %p54 = scmp.eq.s32.totalorder %s32, 1
      %p55 = por %p53, %p54
      %p57 = scmp.ne.s32.totalorder %s40, %s56
      %p58 = scmp.eq.s32.totalorder %s32, 0
      %p59 = por %p57, %p58
      %s60 = ssub.s32 %s26, %s33
      %p61 = scmp.eq.s32.totalorder %s60, 0
      %s63 = sadd.s32 %s62, 1
      %s64 = scalar_select %p61, %s62, %s63
      %p67 = pneg %p61
      %p68 = scmp.eq.s32.totalorder %s26, 1
      %p69 = por %p67, %p68
      %p70 = scmp.ne.s32.totalorder %s62, %s65
      %p71 = scmp.eq.s32.totalorder %s26, 0
      %p72 = por %p70, %p71
      %p73 = scmp.ne.s32.totalorder %s62, %s65
      %p74 = scmp.eq.s32.totalorder %s31, 1
      %p75 = por %p73, %p74
      %p76 = scmp.ne.s32.totalorder %s65, %s66
      %p77 = scmp.eq.s32.totalorder %s31, 0
      %p78 = por %p76, %p77
      %p79 = scmp.ne.s32.totalorder %s65, %s66
      %p80 = scmp.eq.s32.totalorder %s32, 1
      %p81 = por %p79, %p80
      %p83 = scmp.ne.s32.totalorder %s66, %s82
      %p84 = scmp.eq.s32.totalorder %s32, 0
      %p85 = por %p83, %p84
      %s86 = ssub.s32 %s26, %s33
      %p87 = scmp.eq.s32.totalorder %s86, 0
      %s89 = sadd.s32 %s88, 1
      %s90 = scalar_select %p87, %s88, %s89
      %p93 = pneg %p87
      %p94 = scmp.eq.s32.totalorder %s26, 1
      %p95 = por %p93, %p94
      %p96 = scmp.ne.s32.totalorder %s88, %s91
      %p97 = scmp.eq.s32.totalorder %s26, 0
      %p98 = por %p96, %p97
      %p99 = scmp.ne.s32.totalorder %s88, %s91
      %p100 = scmp.eq.s32.totalorder %s31, 1
      %p101 = por %p99, %p100
      %p102 = scmp.ne.s32.totalorder %s91, %s92
      %p103 = scmp.eq.s32.totalorder %s31, 0
      %p104 = por %p102, %p103
      %p105 = scmp.ne.s32.totalorder %s91, %s92
      %p106 = scmp.eq.s32.totalorder %s32, 1
      %p107 = por %p105, %p106
      %p109 = scmp.ne.s32.totalorder %s92, %s108
      %p110 = scmp.eq.s32.totalorder %s32, 0
      %p111 = por %p109, %p110
      %s112 = ssub.s32 %s26, %s33
      %p113 = scmp.eq.s32.totalorder %s112, 0
      %s115 = sadd.s32 %s114, 1
      %s116 = scalar_select %p113, %s114, %s115
      %p119 = pneg %p113
      %p120 = scmp.eq.s32.totalorder %s26, 1
      %p121 = por %p119, %p120
      %p122 = scmp.ne.s32.totalorder %s114, %s117
      %p123 = scmp.eq.s32.totalorder %s26, 0
      %p124 = por %p122, %p123
      %p125 = scmp.ne.s32.totalorder %s114, %s117
      %p126 = scmp.eq.s32.totalorder %s31, 1
      %p127 = por %p125, %p126
      %p128 = scmp.ne.s32.totalorder %s117, %s118
      %p129 = scmp.eq.s32.totalorder %s31, 0
      %p130 = por %p128, %p129
      %p131 = scmp.ne.s32.totalorder %s117, %s118
      %p132 = scmp.eq.s32.totalorder %s32, 1
      %p133 = por %p131, %p132
      %p135 = scmp.ne.s32.totalorder %s118, %s134
      %p136 = scmp.eq.s32.totalorder %s32, 0
      %p137 = por %p135, %p136
      %s138 = ssub.s32 %s26, %s33
      %p139 = scmp.eq.s32.totalorder %s138, 0
      %s141 = sadd.s32 %s140, 1
      %s142 = scalar_select %p139, %s140, %s141
      %p145 = pneg %p139
      %p146 = scmp.eq.s32.totalorder %s26, 1
      %p147 = por %p145, %p146
      %p148 = scmp.ne.s32.totalorder %s140, %s143
      %p149 = scmp.eq.s32.totalorder %s26, 0
      %p150 = por %p148, %p149
      %p151 = scmp.ne.s32.totalorder %s140, %s143
      %p152 = scmp.eq.s32.totalorder %s31, 1
      %p153 = por %p151, %p152
      %p154 = scmp.ne.s32.totalorder %s143, %s144
      %p155 = scmp.eq.s32.totalorder %s31, 0
      %p156 = por %p154, %p155
      %p157 = scmp.ne.s32.totalorder %s143, %s144
      %p158 = scmp.eq.s32.totalorder %s32, 1
      %p159 = por %p157, %p158
      %p161 = scmp.ne.s32.totalorder %s144, %s160
      %p162 = scmp.eq.s32.totalorder %s32, 0
      %p163 = por %p161, %p162
      %s165 = sadd.s32 %s164, 1
      %p168 = scmp.eq.s32.totalorder %s26, 1
      %p169 = scmp.ne.s32.totalorder %s164, %s166
      %p170 = scmp.eq.s32.totalorder %s26, 0
      %p171 = por %p169, %p170
      %p172 = scmp.ne.s32.totalorder %s164, %s166
      %p173 = scmp.eq.s32.totalorder %s31, 1
      %p174 = por %p172, %p173
      %p175 = scmp.ne.s32.totalorder %s166, %s167
      %p176 = scmp.eq.s32.totalorder %s31, 0
      %p177 = por %p175, %p176
      %p178 = scmp.ne.s32.totalorder %s166, %s167
      %p179 = scmp.eq.s32.totalorder %s32, 1
      %p180 = por %p178, %p179
      %p182 = scmp.ne.s32.totalorder %s167, %s181
      %p183 = scmp.eq.s32.totalorder %s32, 0
      %p184 = por %p182, %p183
      %s186 = sadd.s32 %s185, 1
      %p189 = scmp.eq.s32.totalorder %s26, 1
      %p190 = scmp.ne.s32.totalorder %s185, %s187
      %p191 = scmp.eq.s32.totalorder %s26, 0
      %p192 = por %p190, %p191
      %p193 = scmp.ne.s32.totalorder %s185, %s187
      %p194 = scmp.eq.s32.totalorder %s31, 1
      %p195 = por %p193, %p194
      %p196 = scmp.ne.s32.totalorder %s187, %s188
      %p197 = scmp.eq.s32.totalorder %s31, 0
      %p198 = por %p196, %p197
      %p199 = scmp.ne.s32.totalorder %s187, %s188
      %p200 = scmp.eq.s32.totalorder %s32, 1
      %p201 = por %p199, %p200
      %p203 = scmp.ne.s32.totalorder %s188, %s202
      %p204 = scmp.eq.s32.totalorder %s32, 0
      %p205 = por %p203, %p204
      %s207 = sadd.s32 %s206, 1
      %p210 = scmp.eq.s32.totalorder %s26, 1
      %p211 = scmp.ne.s32.totalorder %s206, %s208
      %p212 = scmp.eq.s32.totalorder %s26, 0
      %p213 = por %p211, %p212
      %p214 = scmp.ne.s32.totalorder %s206, %s208
      %p215 = scmp.eq.s32.totalorder %s31, 1
      %p216 = por %p214, %p215
      %p217 = scmp.ne.s32.totalorder %s208, %s209
      %p218 = scmp.eq.s32.totalorder %s31, 0
      %p219 = por %p217, %p218
      %p220 = scmp.ne.s32.totalorder %s208, %s209
      %p221 = scmp.eq.s32.totalorder %s32, 1
      %p222 = por %p220, %p221
      %p224 = scmp.ne.s32.totalorder %s209, %s223
      %p225 = scmp.eq.s32.totalorder %s32, 0
      %p226 = por %p224, %p225
      %s228 = sadd.s32 %s227, 1
      %p231 = scmp.eq.s32.totalorder %s26, 1
      %p232 = scmp.ne.s32.totalorder %s227, %s229
      %p233 = scmp.eq.s32.totalorder %s26, 0
      %p234 = por %p232, %p233
      %p235 = scmp.ne.s32.totalorder %s227, %s229
      %p236 = scmp.eq.s32.totalorder %s31, 1
      %p237 = por %p235, %p236
      %p238 = scmp.ne.s32.totalorder %s229, %s230
      %p239 = scmp.eq.s32.totalorder %s31, 0
      %p240 = por %p238, %p239
      %p241 = scmp.ne.s32.totalorder %s229, %s230
      %p242 = scmp.eq.s32.totalorder %s32, 1
      %p243 = por %p241, %p242
      %p245 = scmp.ne.s32.totalorder %s230, %s244
      %p246 = scmp.eq.s32.totalorder %s32, 0
      %p247 = por %p245, %p246
      %s249 = sadd.s32 %s248, 1
      %p252 = scmp.eq.s32.totalorder %s26, 1
      %p253 = scmp.ne.s32.totalorder %s248, %s250
      %p254 = scmp.eq.s32.totalorder %s26, 0
      %p255 = por %p253, %p254
      %p256 = scmp.ne.s32.totalorder %s248, %s250
      %p257 = scmp.eq.s32.totalorder %s31, 1
      %p258 = por %p256, %p257
      %p259 = scmp.ne.s32.totalorder %s250, %s251
      %p260 = scmp.eq.s32.totalorder %s31, 0
      %p261 = por %p259, %p260
      %p262 = scmp.ne.s32.totalorder %s250, %s251
      %p263 = scmp.eq.s32.totalorder %s32, 1
      %p264 = por %p262, %p263
      %p266 = scmp.ne.s32.totalorder %s251, %s265
      %p267 = scmp.eq.s32.totalorder %s32, 0
      %p268 = por %p266, %p267
      %s269 = ssub.s32 %s26, %s33
      %p270 = scmp.eq.s32.totalorder %s269, 0
      %s272 = sadd.s32 %s271, 1
      %s273 = scalar_select %p270, %s271, %s272
      %p276 = pneg %p270
      %p277 = scmp.eq.s32.totalorder %s26, 1
      %p278 = por %p276, %p277
      %p279 = scmp.ne.s32.totalorder %s271, %s274
      %p280 = scmp.eq.s32.totalorder %s26, 0
      %p281 = por %p279, %p280
      %p282 = scmp.ne.s32.totalorder %s271, %s274
      %p283 = scmp.eq.s32.totalorder %s31, 1
      %p284 = por %p282, %p283
      %p285 = scmp.ne.s32.totalorder %s274, %s275
      %p286 = scmp.eq.s32.totalorder %s31, 0
      %p287 = por %p285, %p286
      %p288 = scmp.ne.s32.totalorder %s274, %s275
      %p289 = scmp.eq.s32.totalorder %s32, 1
      %p290 = por %p288, %p289
      %p292 = scmp.ne.s32.totalorder %s275, %s291
      %p293 = scmp.eq.s32.totalorder %s32, 0
      %p294 = por %p292, %p293
      %p295 = scmp.le.s32.totalorder 1, %s26
      %p296 = scmp.lt.s32.totalorder %s26, 3
      %p297 = pnand %p295, %p296
      %p298 = pneg %p297
      // Predicated region
      $region9: #{tpu_custom_call.1} parent=5 // pred_check
        _
      $region10: #{tpu_custom_call.1} parent=5 // pred_check_branch
        %300 = sbr.rel (%p297) target = $region12
      $region11: #{tpu_custom_call.1} parent=5 // pred_region
        %s301 = ssub.s32 %s26, 1
        // Predicated region
        $region13: #{tpu_custom_call.1} parent=11 // pred_check
          %p302 = pneg %p177
        $region14: #{tpu_custom_call.1} parent=11 // pred_check_branch
          %304 = sbr.rel (%p302) target = $region16
        $region15: #{tpu_custom_call.1} parent=11 // pred_region
          %s306 = ssub.s32 2048, 2048
          %307 = vsyncadd [#allocation6], %s306
          %s308 = sshll.u32 [#allocation7], 4
          %s309 = int_to_ptr.vmem [resolvable:$true] %s308
          %314 = dma.hbm_to_vmem [thread:$0]  %s5, 2048, %s309, [#allocation6], 64, 64, 4
        $region16: #{tpu_custom_call.1} parent=11 // pred_fallthru
          _
        // Predicated region
        $region17: #{tpu_custom_call.1} parent=11 // pred_check
          %p315 = pneg %p198
        $region18: #{tpu_custom_call.1} parent=11 // pred_check_branch
          %317 = sbr.rel (%p315) target = $region20
        $region19: #{tpu_custom_call.1} parent=11 // pred_region
          %s319 = ssub.s32 256, 256
          %320 = vsyncadd [#allocation9], %s319
          %s321 = sshll.u32 [#allocation8], 4
          %s322 = int_to_ptr.vmem [resolvable:$true] %s321
          %327 = dma.hbm_to_vmem [thread:$0]  %s6, 256, %s322, [#allocation9], 128, 128, 8
        $region20: #{tpu_custom_call.1} parent=11 // pred_fallthru
          _
        // Predicated region
        $region21: #{tpu_custom_call.1} parent=11 // pred_check
          %p328 = pneg %p219
        $region22: #{tpu_custom_call.1} parent=11 // pred_check_branch
          %330 = sbr.rel (%p328) target = $region24
        $region23: #{tpu_custom_call.1} parent=11 // pred_region
          %s332 = ssub.s32 256, 256
          %333 = vsyncadd [#allocation9], %s332
          %s334 = sshll.u32 [#allocation10], 4
          %s335 = int_to_ptr.vmem [resolvable:$true] %s334
          %340 = dma.hbm_to_vmem [thread:$0]  %s7, 256, %s335, [#allocation9], 64, 64, 4
        $region24: #{tpu_custom_call.1} parent=11 // pred_fallthru
          _
        // Predicated region
        $region25: #{tpu_custom_call.1} parent=11 // pred_check
          %p341 = pneg %p240
        $region26: #{tpu_custom_call.1} parent=11 // pred_check_branch
          %343 = sbr.rel (%p341) target = $region28
        $region27: #{tpu_custom_call.1} parent=11 // pred_region
          _
        $region28: #{tpu_custom_call.1} parent=11 // pred_fallthru
          _
        // Predicated region
        $region29: #{tpu_custom_call.1} parent=11 // pred_check
          %p344 = pneg %p261
        $region30: #{tpu_custom_call.1} parent=11 // pred_check_branch
          %346 = sbr.rel (%p344) target = $region32
        $region31: #{tpu_custom_call.1} parent=11 // pred_region
          _
        $region32: #{tpu_custom_call.1} parent=11 // pred_fallthru
          _
      $region12: #{tpu_custom_call.1} parent=5 // pred_fallthru
        _
      %p347 = scmp.lt.s32.totalorder %s26, 2
      // Predicated region
      $region33: #{tpu_custom_call.1} parent=5 // pred_check
        %p348 = pneg %p347
      $region34: #{tpu_custom_call.1} parent=5 // pred_check_branch
        %350 = sbr.rel (%p348) target = $region36
      $region35: #{tpu_custom_call.1} parent=5 // pred_region
        // Predicated region
        $region37: #{tpu_custom_call.1} parent=35 // pred_check
          %p351 = pneg %p46
        $region38: #{tpu_custom_call.1} parent=35 // pred_check_branch
          %353 = sbr.rel (%p351) target = $region40
        $region39: #{tpu_custom_call.1} parent=35 // pred_region
          %p354 = scmp.lt.s32.totalorder %s26, 1
          %s355 = scalar_select %p354, %s26, 1
          %s356 = smul.addr %s355, 8
          %s357 = scalar_lea.vmem %s0, %s356
        $region40: #{tpu_custom_call.1} parent=35 // pred_fallthru
          _
        // Predicated region
        $region41: #{tpu_custom_call.1} parent=35 // pred_check
          %p358 = pneg %p72
        $region42: #{tpu_custom_call.1} parent=35 // pred_check_branch
          %360 = sbr.rel (%p358) target = $region44
        $region43: #{tpu_custom_call.1} parent=35 // pred_region
          %p361 = scmp.lt.s32.totalorder %s26, 1
          %s362 = scalar_select %p361, %s26, 1
          %s363 = smul.addr %s362, 8
          %s364 = scalar_lea.vmem %s1, %s363
        $region44: #{tpu_custom_call.1} parent=35 // pred_fallthru
          _
        // Predicated region
        $region45: #{tpu_custom_call.1} parent=35 // pred_check
          %p365 = pneg %p98
        $region46: #{tpu_custom_call.1} parent=35 // pred_check_branch
          %367 = sbr.rel (%p365) target = $region48
        $region47: #{tpu_custom_call.1} parent=35 // pred_region
          %p368 = scmp.lt.s32.totalorder %s26, 1
          %s369 = scalar_select %p368, %s26, 1
          %s370 = smul.addr %s369, 8
          %s371 = scalar_lea.vmem %s2, %s370
        $region48: #{tpu_custom_call.1} parent=35 // pred_fallthru
          _
        // Predicated region
        $region49: #{tpu_custom_call.1} parent=35 // pred_check
          %p372 = pneg %p124
        $region50: #{tpu_custom_call.1} parent=35 // pred_check_branch
          %374 = sbr.rel (%p372) target = $region52
        $region51: #{tpu_custom_call.1} parent=35 // pred_region
          %s375 = sand.u32 %s114, 1
          %s376 = scalar_lea.sflag [#allocation3], %s375
          %s377 = sand.u32 %s114, 1
          %s378 = smul.addr %s377, 8
          %s379 = scalar_lea.vmem [#allocation2], %s378
          %s381 = ssub.s32 128, 128
          %382 = vsyncadd %s376, %s381
          %s383 = smul.addr %s26, 128
          %s384 = scalar_lea.hbm %s3, %s383
          %s386 = sshll.u32 %s379, 4
          %s387 = int_to_ptr.vmem [resolvable:$true] %s386
          %389 = dma.hbm_to_vmem [thread:$0]  %s384, 128, %s387, %s376
        $region52: #{tpu_custom_call.1} parent=35 // pred_fallthru
          _
        // Predicated region
        $region53: #{tpu_custom_call.1} parent=35 // pred_check
          %p390 = pneg %p150
        $region54: #{tpu_custom_call.1} parent=35 // pred_check_branch
          %392 = sbr.rel (%p390) target = $region56
        $region55: #{tpu_custom_call.1} parent=35 // pred_region
          %s393 = sand.u32 %s26, 1
          %s394 = scalar_lea.sflag [#allocation6], %s393
          %s395 = sand.u32 %s140, 1
          %s396 = smul.addr %s395, 8
          %s397 = scalar_lea.vmem [#allocation5], %s396
          %s399 = ssub.s32 128, 128
          %400 = vsyncadd %s394, %s399
          %s401 = smul.addr %s26, 128
          %s402 = scalar_lea.hbm %s4, %s401
          %s404 = sshll.u32 %s397, 4
          %s405 = int_to_ptr.vmem [resolvable:$true] %s404
          %407 = dma.hbm_to_vmem [thread:$0]  %s402, 128, %s405, %s394
        $region56: #{tpu_custom_call.1} parent=35 // pred_fallthru
          _
      $region36: #{tpu_custom_call.1} parent=5 // pred_fallthru
        _
      %p408 = scmp.le.s32.totalorder 1, %s26
      %p409 = scmp.lt.s32.totalorder %s26, 3
      %p410 = pnand %p408, %p409
      %p411 = pneg %p410
      // Predicated region
      $region57: #{tpu_custom_call.1} parent=5 // pred_check
        _
      $region58: #{tpu_custom_call.1} parent=5 // pred_check_branch
        %413 = sbr.rel (%p410) target = $region60
      $region59: #{tpu_custom_call.1} parent=5 // pred_region
        %s414 = ssub.s32 %s26, 1
        %s415 = sand.u32 %s117, 1
        %s416 = scalar_lea.sflag [#allocation3], %s415
        %s417 = sand.u32 %s117, 1
        %s418 = smul.addr %s417, 8
        %s419 = scalar_lea.vmem [#allocation2], %s418
        // Predicated region
        $region61: #{tpu_custom_call.1} parent=59 // pred_check
          %p420 = pneg %p130
        $region62: #{tpu_custom_call.1} parent=59 // pred_check_branch
          %422 = sbr.rel (%p420) target = $region64
        $region63: #{tpu_custom_call.1} parent=59 // pred_region
          %423 = dma.done %s416, 128
        $region64: #{tpu_custom_call.1} parent=59 // pred_fallthru
          _
        %s424 = sand.u32 %s31, 1
        %s425 = scalar_lea.sflag [#allocation6], %s424
        %s426 = sand.u32 %s143, 1
        %s427 = smul.addr %s426, 8
        %s428 = scalar_lea.vmem [#allocation5], %s427
        // Predicated region
        $region65: #{tpu_custom_call.1} parent=59 // pred_check
          %p429 = pneg %p156
        $region66: #{tpu_custom_call.1} parent=59 // pred_check_branch
          %431 = sbr.rel (%p429) target = $region68
        $region67: #{tpu_custom_call.1} parent=59 // pred_region
          %432 = dma.done %s425, 128
        $region68: #{tpu_custom_call.1} parent=59 // pred_fallthru
          _
        // Predicated region
        $region69: #{tpu_custom_call.1} parent=59 // pred_check
          %p433 = pneg %p177
        $region70: #{tpu_custom_call.1} parent=59 // pred_check_branch
          %435 = sbr.rel (%p433) target = $region72
        $region71: #{tpu_custom_call.1} parent=59 // pred_region
          %436 = dma.done [#allocation6], 2048
        $region72: #{tpu_custom_call.1} parent=59 // pred_fallthru
          _
        // Predicated region
        $region73: #{tpu_custom_call.1} parent=59 // pred_check
          %p437 = pneg %p198
        $region74: #{tpu_custom_call.1} parent=59 // pred_check_branch
          %439 = sbr.rel (%p437) target = $region76
        $region75: #{tpu_custom_call.1} parent=59 // pred_region
          %440 = dma.done [#allocation9], 256
        $region76: #{tpu_custom_call.1} parent=59 // pred_fallthru
          _
        // Predicated region
        $region77: #{tpu_custom_call.1} parent=59 // pred_check
          %p441 = pneg %p219
        $region78: #{tpu_custom_call.1} parent=59 // pred_check_branch
          %443 = sbr.rel (%p441) target = $region80
        $region79: #{tpu_custom_call.1} parent=59 // pred_region
          %444 = dma.done [#allocation9], 256
        $region80: #{tpu_custom_call.1} parent=59 // pred_fallthru
          _
        %p445 = scmp.lt.s32.totalorder %s31, 1
        %s446 = scalar_select %p445, %s31, 1
        %s447 = smul.addr %s446, 8
        %s448 = scalar_lea.vmem %s0, %s447
        %p449 = pneg %p52
        %p450 = pneg %p49
        %p451 = scmp.lt.s32.totalorder %s31, 1
        %s452 = scalar_select %p451, %s31, 1
        %s453 = smul.addr %s452, 8
        %s454 = scalar_lea.vmem %s1, %s453
        %p455 = pneg %p78
        %p456 = pneg %p75
        %p457 = scmp.lt.s32.totalorder %s31, 1
        %s458 = scalar_select %p457, %s31, 1
        %s459 = smul.addr %s458, 8
        %s460 = scalar_lea.vmem %s2, %s459
        %p461 = pneg %p104
        %p462 = pneg %p101
        %s463 = sand.u32 %s117, 1
        %s464 = scalar_lea.sflag [#allocation3], %s463
        %s465 = sand.u32 %s117, 1
        %s466 = smul.addr %s465, 8
        %s467 = scalar_lea.vmem [#allocation2], %s466
        %p468 = pneg %p130
        %p469 = pneg %p127
        %s470 = sand.u32 %s31, 1
        %s471 = scalar_lea.sflag [#allocation6], %s470
        %s472 = sand.u32 %s143, 1
        %s473 = smul.addr %s472, 8
        %s474 = scalar_lea.vmem [#allocation5], %s473
        %p475 = pneg %p156
        %p476 = pneg %p153
        %p477 = pneg %p177
        %p478 = pneg %p174
        %p479 = pneg %p198
        %p480 = pneg %p195
        %p481 = pneg %p219
        %p482 = pneg %p216
        %p483 = pneg %p240
        %p484 = pneg %p237
        %p485 = pneg %p261
        %p486 = pneg %p258
        %p487 = pneg %p287
        %p488 = pneg %p284
        %s489 = sand.u32 %s274, 1
        %s490 = scalar_lea.sflag [#allocation4], %s489
        %s491 = sand.u32 %s274, 1
        %s492 = smul.addr %s491, 8
        %s493 = scalar_lea.vmem [#allocation11], %s492
        %p494 = scmp.lt.s32.totalorder %s31, 1
        %s495 = scalar_select %p494, %s31, 1
        %s496 = smul.addr %s495, 8
        %s497 = scalar_lea.vmem %s0, %s496
        %p498 = scmp.lt.s32.totalorder %s31, 1
        %s499 = scalar_select %p498, %s31, 1
        %s500 = smul.addr %s499, 8
        %s501 = scalar_lea.vmem %s1, %s500
        %p502 = scmp.lt.s32.totalorder %s31, 1
        %s503 = scalar_select %p502, %s31, 1
        %s504 = smul.addr %s503, 8
        %s505 = scalar_lea.vmem %s2, %s504
        %v507 = vld [vmem:[%s497] sm:$0xff]
        %v508 = vld [vmem:[%s501] sm:$0xff]
        %v509 = vld [vmem:[%s505] sm:$0xff]
        %v510 = vld [vmem:[%s419] sm:$0xff]
        %v511 = vld [vmem:[%s428] sm:$0xff]
        %v512 = vld [vmem:[#allocation7] sm:$0xf]
        %v513 = vld [vmem:[#allocation7 + $0x4] sm:$0xf]
        %v514 = vld [vmem:[#allocation7 + $0x8] sm:$0xf]
        %v515 = vld [vmem:[#allocation7 + $0xc] sm:$0xf]
        %v516 = vld [vmem:[#allocation8] sm:$0x1]
        %s517 = scalar_lea.vmem [#allocation7], 16
        %v518 = vld [vmem:[%s517] sm:$0xf]
        %v519 = vld [vmem:[%s517 + $0x4] sm:$0xf]
        %v520 = vld [vmem:[%s517 + $0x8] sm:$0xf]
        %v521 = vld [vmem:[%s517 + $0xc] sm:$0xf]
        %v522 = vld [vmem:[#allocation8 + $0x1] sm:$0x1]
        %s523 = scalar_lea.vmem [#allocation7], 32
        %v524 = vld [vmem:[%s523] sm:$0xf]
        %v525 = vld [vmem:[%s523 + $0x4] sm:$0xf]
        %v526 = vld [vmem:[%s523 + $0x8] sm:$0xf]
        %v527 = vld [vmem:[%s523 + $0xc] sm:$0xf]
        %v528 = vld [vmem:[#allocation8 + $0x2] sm:$0x1]
        %s529 = scalar_lea.vmem [#allocation7], 48
        %v530 = vld [vmem:[%s529] sm:$0xf]
        %v531 = vld [vmem:[%s529 + $0x4] sm:$0xf]
        %v532 = vld [vmem:[%s529 + $0x8] sm:$0xf]
        %v533 = vld [vmem:[%s529 + $0xc] sm:$0xf]
        %v534 = vld [vmem:[#allocation8 + $0x3] sm:$0x1]
        %v535 = vpack.c.bf16 %v507, %v507
        %v536 = vlaneseq
        %v537 = vshrl.u32 %v536, 7
        %v538 = vsub.s32 0, %v537
        %v539 = vrot.slane %v516, %v538
        %v544 = vunpack.c.l.b16 %v512
        %v545 = vunpack.c.l.b16 %v513
        %v546 = vunpack.c.l.b16 %v514
        %v547 = vunpack.c.l.b16 %v515
        %v548 = vpack.c.b16 %v545, %v544
        %v549 = vpack.c.b16 %v547, %v546
        %vm552 = vcmask 261120
        %v554 = vsel %vm552, %v535, 0
        %556 = vmatprep.subr.bf16.mxu0 0
        %557 = vmatpush1.bf16.msra.mxu0 %v548
        %558 = vmatprep.subr.bf16.mxu0 0
        %559 = vmatpush1.bf16.msra.mxu0 %v549
        %560 = vmatprep.subr.bf16.mxu0 0
        %561 = vmatpush1.bf16.msra.mxu0 0
        %562 = vmatprep.subr.bf16.mxu0 0
        %563 = vmatpush1.bf16.msra.mxu0 0
        %564 = vmatprep.subr.bf16.mxu0 0
        %565 = vmatpush1.bf16.msra.mxu0 0
        %566 = vmatprep.subr.bf16.mxu0 0
        %567 = vmatpush1.bf16.msra.mxu0 0
        %568 = vmatprep.subr.bf16.mxu0 0
        %569 = vmatpush1.bf16.msra.mxu0 0
        %570 = vmatprep.subr.bf16.mxu0 0
        %571 = vmatpush1.bf16.msra.mxu0 0
        %572 = vmatprep.subr.bf16.mxu0 0
        %573 = vmatpush1.bf16.msra.mxu0 0
        %574 = vmatprep.subr.bf16.mxu0 0
        %575 = vmatpush1.bf16.msra.mxu0 0
        %576 = vmatprep.subr.bf16.mxu0 0
        %577 = vmatpush1.bf16.msra.mxu0 0
        %578 = vmatprep.subr.bf16.mxu0 0
        %579 = vmatpush1.bf16.msra.mxu0 0
        %580 = vmatprep.subr.bf16.mxu0 0
        %581 = vmatpush1.bf16.msra.mxu0 0
        %582 = vmatprep.subr.bf16.mxu0 0
        %583 = vmatpush1.bf16.msra.mxu0 0
        %584 = vmatprep.subr.bf16.mxu0 0
        %585 = vmatpush1.bf16.msra.mxu0 0
        %586 = vmatprep.subr.bf16.mxu0 0
        %587 = vmatpush1.bf16.msra.mxu0 0
        %588 = vmatprep.mubr.bf16.mxu0 0
        %589 = vmatmul.mubr.bf16.gmra.mrb[0].mxu0 %v554
        %v590 = vpop.f32.mrb[0].mxu0
        %v591 = vadd.f32 %v539, %v590
        %v592 = vpop.f32.mrb[0].mxu0
        %v593 = vpop.f32.mrb[0].mxu0
        %v594 = vpop.f32.mrb[0].mxu0
        %595 = vdwg.mxu0
        %v596 = vlaneseq
        %v597 = vshrl.u32 %v596, 7
        %v598 = vsub.s32 0, %v597
        %v599 = vrot.slane %v522, %v598
        %v604 = vunpack.c.l.b16 %v518
        %v605 = vunpack.c.l.b16 %v519
        %v606 = vunpack.c.l.b16 %v520
        %v607 = vunpack.c.l.b16 %v521
        %v608 = vpack.c.b16 %v605, %v604
        %v609 = vpack.c.b16 %v607, %v606
        %612 = vmatprep.subr.bf16.mxu0 0
        %613 = vmatpush1.bf16.msra.mxu0 %v608
        %614 = vmatprep.subr.bf16.mxu0 0
        %615 = vmatpush1.bf16.msra.mxu0 %v609
        %616 = vmatprep.subr.bf16.mxu0 0
        %617 = vmatpush1.bf16.msra.mxu0 0
        %618 = vmatprep.subr.bf16.mxu0 0
        %619 = vmatpush1.bf16.msra.mxu0 0
        %620 = vmatprep.subr.bf16.mxu0 0
        %621 = vmatpush1.bf16.msra.mxu0 0
        %622 = vmatprep.subr.bf16.mxu0 0
        %623 = vmatpush1.bf16.msra.mxu0 0
        %624 = vmatprep.subr.bf16.mxu0 0
        %625 = vmatpush1.bf16.msra.mxu0 0
        %626 = vmatprep.subr.bf16.mxu0 0
        %627 = vmatpush1.bf16.msra.mxu0 0
        %628 = vmatprep.subr.bf16.mxu0 0
        %629 = vmatpush1.bf16.msra.mxu0 0
        %630 = vmatprep.subr.bf16.mxu0 0
        %631 = vmatpush1.bf16.msra.mxu0 0
        %632 = vmatprep.subr.bf16.mxu0 0
        %633 = vmatpush1.bf16.msra.mxu0 0
        %634 = vmatprep.subr.bf16.mxu0 0
        %635 = vmatpush1.bf16.msra.mxu0 0
        %636 = vmatprep.subr.bf16.mxu0 0
        %637 = vmatpush1.bf16.msra.mxu0 0
        %638 = vmatprep.subr.bf16.mxu0 0
        %639 = vmatpush1.bf16.msra.mxu0 0
        %640 = vmatprep.subr.bf16.mxu0 0
        %641 = vmatpush1.bf16.msra.mxu0 0
        %642 = vmatprep.subr.bf16.mxu0 0
        %643 = vmatpush1.bf16.msra.mxu0 0
        %644 = vmatprep.mubr.bf16.mxu0 0
        %645 = vmatmul.mubr.bf16.gmra.mrb[0].mxu0 %v554
        %v646 = vpop.f32.mrb[0].mxu0
        %v647 = vadd.f32 %v599, %v646
        %v648 = vpop.f32.mrb[0].mxu0
        %v649 = vpop.f32.mrb[0].mxu0
        %v650 = vpop.f32.mrb[0].mxu0
        %651 = vdwg.mxu0
        %v652 = vlaneseq
        %v653 = vshrl.u32 %v652, 7
        %v654 = vsub.s32 0, %v653
        %v655 = vrot.slane %v528, %v654
        %v660 = vunpack.c.l.b16 %v524
        %v661 = vunpack.c.l.b16 %v525
        %v662 = vunpack.c.l.b16 %v526
        %v663 = vunpack.c.l.b16 %v527
        %v664 = vpack.c.b16 %v661, %v660
        %v665 = vpack.c.b16 %v663, %v662
        %668 = vmatprep.subr.bf16.mxu0 0
        %669 = vmatpush1.bf16.msra.mxu0 %v664
        %670 = vmatprep.subr.bf16.mxu0 0
        %671 = vmatpush1.bf16.msra.mxu0 %v665
        %672 = vmatprep.subr.bf16.mxu0 0
        %673 = vmatpush1.bf16.msra.mxu0 0
        %674 = vmatprep.subr.bf16.mxu0 0
        %675 = vmatpush1.bf16.msra.mxu0 0
        %676 = vmatprep.subr.bf16.mxu0 0
        %677 = vmatpush1.bf16.msra.mxu0 0
        %678 = vmatprep.subr.bf16.mxu0 0
        %679 = vmatpush1.bf16.msra.mxu0 0
        %680 = vmatprep.subr.bf16.mxu0 0
        %681 = vmatpush1.bf16.msra.mxu0 0
        %682 = vmatprep.subr.bf16.mxu0 0
        %683 = vmatpush1.bf16.msra.mxu0 0
        %684 = vmatprep.subr.bf16.mxu0 0
        %685 = vmatpush1.bf16.msra.mxu0 0
        %686 = vmatprep.subr.bf16.mxu0 0
        %687 = vmatpush1.bf16.msra.mxu0 0
        %688 = vmatprep.subr.bf16.mxu0 0
        %689 = vmatpush1.bf16.msra.mxu0 0
        %690 = vmatprep.subr.bf16.mxu0 0
        %691 = vmatpush1.bf16.msra.mxu0 0
        %692 = vmatprep.subr.bf16.mxu0 0
        %693 = vmatpush1.bf16.msra.mxu0 0
        %694 = vmatprep.subr.bf16.mxu0 0
        %695 = vmatpush1.bf16.msra.mxu0 0
        %696 = vmatprep.subr.bf16.mxu0 0
        %697 = vmatpush1.bf16.msra.mxu0 0
        %698 = vmatprep.subr.bf16.mxu0 0
        %699 = vmatpush1.bf16.msra.mxu0 0
        %700 = vmatprep.mubr.bf16.mxu0 0
        %701 = vmatmul.mubr.bf16.gmra.mrb[0].mxu0 %v554
        %v702 = vpop.f32.mrb[0].mxu0
        %v703 = vadd.f32 %v655, %v702
        %v704 = vpop.f32.mrb[0].mxu0
        %v705 = vpop.f32.mrb[0].mxu0
        %v706 = vpop.f32.mrb[0].mxu0
        %707 = vdwg.mxu0
        %v708 = vpack.c.bf16 %v591, %v591
        %v709 = vpack.c.bf16 %v647, %v647
        %v710 = vpack.c.bf16 %v703, %v703
        %vm711 = vcmask 64512
        %v713 = vsel %vm711, %v708, 0
        %v716 = vsel %vm711, %v709, 0
        %718 = vmatprep.subr.bf16.mxu0 0
        %719 = vmatpush1.bf16.xpose.msra.mxu0 %v716
        %720 = vmatprep.subr.bf16.mxu0 0
        %721 = vmatpush1.bf16.xpose.msra.mxu0 0
        %722 = vmatprep.subr.bf16.mxu0 0
        %723 = vmatpush1.bf16.xpose.msra.mxu0 0
        %724 = vmatprep.subr.bf16.mxu0 0
        %725 = vmatpush1.bf16.xpose.msra.mxu0 0
        %726 = vmatprep.subr.bf16.mxu0 0
        %727 = vmatpush1.bf16.xpose.msra.mxu0 0
        %728 = vmatprep.subr.bf16.mxu0 0
        %729 = vmatpush1.bf16.xpose.msra.mxu0 0
        %730 = vmatprep.subr.bf16.mxu0 0
        %731 = vmatpush1.bf16.xpose.msra.mxu0 0
        %732 = vmatprep.subr.bf16.mxu0 0
        %733 = vmatpush1.bf16.xpose.msra.mxu0 0
        %734 = vmatprep.subr.bf16.mxu0 0
        %735 = vmatpush1.bf16.xpose.msra.mxu0 0
        %736 = vmatprep.subr.bf16.mxu0 0
        %737 = vmatpush1.bf16.xpose.msra.mxu0 0
        %738 = vmatprep.subr.bf16.mxu0 0
        %739 = vmatpush1.bf16.xpose.msra.mxu0 0
        %740 = vmatprep.subr.bf16.mxu0 0
        %741 = vmatpush1.bf16.xpose.msra.mxu0 0
        %742 = vmatprep.subr.bf16.mxu0 0
        %743 = vmatpush1.bf16.xpose.msra.mxu0 0
        %744 = vmatprep.subr.bf16.mxu0 0
        %745 = vmatpush1.bf16.xpose.msra.mxu0 0
        %746 = vmatprep.subr.bf16.mxu0 0
        %747 = vmatpush1.bf16.xpose.msra.mxu0 0
        %748 = vmatprep.subr.bf16.mxu0 0
        %749 = vmatpush1.bf16.xpose.msra.mxu0 0
        %750 = vmatprep.mubr.bf16.mxu0 0
        %751 = vmatmul.mubr.bf16.gmra.mrb[0].mxu0 %v713
        %v752 = vpop.f32.mrb[0].mxu0
        %v753 = vadd.f32 0.0, %v752
        %v754 = vpop.f32.mrb[0].mxu0
        %v755 = vpop.f32.mrb[0].mxu0
        %v756 = vpop.f32.mrb[0].mxu0
        %757 = vdwg.mxu0
        %vm758 = vcmp.eq.s32.totalorder %v510, 0
        %v759 = vsel %vm758, -1e+09, %v753
        %v760 = vmul.f32 %v759, 0.35355338
        %v761 = vsel %vm711, %v760, -inf
        %762 = vmax.xlane.f32.xlu0 %v761
        %v763 = vpop.xlane.xlu0 %762
        %v764 = vsub.f32 %v760, %v763
        %v765 = vmul.f32 %v764, 1.442695
        %v766 = vpow.pop %v765
        %v767 = vsel %vm711, %v766, 0.0
        %768 = vadd.xlane.f32.xlu0 %v767
        %v769 = vpop.xlane.xlu0 %768
        %v770 = vpack.c.bf16 %v766, %v766
        %v772 = vsel %vm711, %v770, 0
        %vm774 = vcmask 1043456
        %v776 = vsel %vm774, %v710, 0
        %778 = vmatprep.subr.bf16.mxu0 0
        %779 = vmatpush1.bf16.msra.mxu0 %v776
        %780 = vmatprep.subr.bf16.mxu0 0
        %781 = vmatpush1.bf16.msra.mxu0 0
        %782 = vmatprep.subr.bf16.mxu0 0
        %783 = vmatpush1.bf16.msra.mxu0 0
        %784 = vmatprep.subr.bf16.mxu0 0
        %785 = vmatpush1.bf16.msra.mxu0 0
        %786 = vmatprep.subr.bf16.mxu0 0
        %787 = vmatpush1.bf16.msra.mxu0 0
        %788 = vmatprep.subr.bf16.mxu0 0
        %789 = vmatpush1.bf16.msra.mxu0 0
        %790 = vmatprep.subr.bf16.mxu0 0
        %791 = vmatpush1.bf16.msra.mxu0 0
        %792 = vmatprep.subr.bf16.mxu0 0
        %793 = vmatpush1.bf16.msra.mxu0 0
        %794 = vmatprep.subr.bf16.mxu0 0
        %795 = vmatpush1.bf16.msra.mxu0 0
        %796 = vmatprep.subr.bf16.mxu0 0
        %797 = vmatpush1.bf16.msra.mxu0 0
        %798 = vmatprep.subr.bf16.mxu0 0
        %799 = vmatpush1.bf16.msra.mxu0 0
        %800 = vmatprep.subr.bf16.mxu0 0
        %801 = vmatpush1.bf16.msra.mxu0 0
        %802 = vmatprep.subr.bf16.mxu0 0
        %803 = vmatpush1.bf16.msra.mxu0 0
        %804 = vmatprep.subr.bf16.mxu0 0
        %805 = vmatpush1.bf16.msra.mxu0 0
        %806 = vmatprep.subr.bf16.mxu0 0
        %807 = vmatpush1.bf16.msra.mxu0 0
        %808 = vmatprep.subr.bf16.mxu0 0
        %809 = vmatpush1.bf16.msra.mxu0 0
        %810 = vmatprep.mubr.bf16.mxu0 0
        %811 = vmatmul.mubr.bf16.gmra.mrb[0].mxu0 %v772
        %v812 = vpop.f32.mrb[0].mxu0
        %v813 = vadd.f32 0.0, %v812
        %v814 = vpop.f32.mrb[0].mxu0
        %v815 = vpop.f32.mrb[0].mxu0
        %v816 = vpop.f32.mrb[0].mxu0
        %817 = vdwg.mxu0
        %v818 = vrcp.pop %v769
        %v819 = vmul.f32 %v813, %v818
        %821 = vrot.lane.b32.xlu0 %v708, 120
        %v822 = vpop.permute.xlu0 %821
        %824 = vrot.lane.b32.xlu0 %v709, 120
        %v825 = vpop.permute.xlu0 %824
        %v827 = vsel %vm711, %v822, 0
        %v830 = vsel %vm711, %v825, 0
        %832 = vmatprep.subr.bf16.mxu0 0
        %833 = vmatpush1.bf16.xpose.msra.mxu0 %v830
        %834 = vmatprep.subr.bf16.mxu0 0
        %835 = vmatpush1.bf16.xpose.msra.mxu0 0
        %836 = vmatprep.subr.bf16.mxu0 0
        %837 = vmatpush1.bf16.xpose.msra.mxu0 0
        %838 = vmatprep.subr.bf16.mxu0 0
        %839 = vmatpush1.bf16.xpose.msra.mxu0 0
        %840 = vmatprep.subr.bf16.mxu0 0
        %841 = vmatpush1.bf16.xpose.msra.mxu0 0
        %842 = vmatprep.subr.bf16.mxu0 0
        %843 = vmatpush1.bf16.xpose.msra.mxu0 0
        %844 = vmatprep.subr.bf16.mxu0 0
        %845 = vmatpush1.bf16.xpose.msra.mxu0 0
        %846 = vmatprep.subr.bf16.mxu0 0
        %847 = vmatpush1.bf16.xpose.msra.mxu0 0
        %848 = vmatprep.subr.bf16.mxu0 0
        %849 = vmatpush1.bf16.xpose.msra.mxu0 0
        %850 = vmatprep.subr.bf16.mxu0 0
        %851 = vmatpush1.bf16.xpose.msra.mxu0 0
        %852 = vmatprep.subr.bf16.mxu0 0
        %853 = vmatpush1.bf16.xpose.msra.mxu0 0
        %854 = vmatprep.subr.bf16.mxu0 0
        %855 = vmatpush1.bf16.xpose.msra.mxu0 0
        %856 = vmatprep.subr.bf16.mxu0 0
        %857 = vmatpush1.bf16.xpose.msra.mxu0 0
        %858 = vmatprep.subr.bf16.mxu0 0
        %859 = vmatpush1.bf16.xpose.msra.mxu0 0
        %860 = vmatprep.subr.bf16.mxu0 0
        %861 = vmatpush1.bf16.xpose.msra.mxu0 0
        %862 = vmatprep.subr.bf16.mxu0 0
        %863 = vmatpush1.bf16.xpose.msra.mxu0 0
        %864 = vmatprep.mubr.bf16.mxu0 0
        %865 = vmatmul.mubr.bf16.gmra.mrb[0].mxu0 %v827
        %v866 = vpop.f32.mrb[0].mxu0
        %v867 = vadd.f32 0.0, %v866
        %v868 = vpop.f32.mrb[0].mxu0
        %v869 = vpop.f32.mrb[0].mxu0
        %v870 = vpop.f32.mrb[0].mxu0
        %871 = vdwg.mxu0
        %v872 = vsel %vm758, -1e+09, %v867
        %v873 = vmul.f32 %v872, 0.35355338
        %v874 = vsel %vm711, %v873, -inf
        %875 = vmax.xlane.f32.xlu0 %v874
        %v876 = vpop.xlane.xlu0 %875
        %v877 = vsub.f32 %v873, %v876
        %v878 = vmul.f32 %v877, 1.442695
        %v879 = vpow.pop %v878
        %v880 = vsel %vm711, %v879, 0.0
        %881 = vadd.xlane.f32.xlu0 %v880
        %v882 = vpop.xlane.xlu0 %881
        %v883 = vpack.c.bf16 %v879, %v879
        %885 = vrot.lane.b32.xlu0 %v710, 120
        %v886 = vpop.permute.xlu0 %885
        %v888 = vsel %vm711, %v883, 0
        %v891 = vsel %vm774, %v886, 0
        %893 = vmatprep.subr.bf16.mxu0 0
        %894 = vmatpush1.bf16.msra.mxu0 %v891
        %895 = vmatprep.subr.bf16.mxu0 0
        %896 = vmatpush1.bf16.msra.mxu0 0
        %897 = vmatprep.subr.bf16.mxu0 0
        %898 = vmatpush1.bf16.msra.mxu0 0
        %899 = vmatprep.subr.bf16.mxu0 0
        %900 = vmatpush1.bf16.msra.mxu0 0
        %901 = vmatprep.subr.bf16.mxu0 0
        %902 = vmatpush1.bf16.msra.mxu0 0
        %903 = vmatprep.subr.bf16.mxu0 0
        %904 = vmatpush1.bf16.msra.mxu0 0
        %905 = vmatprep.subr.bf16.mxu0 0
        %906 = vmatpush1.bf16.msra.mxu0 0
        %907 = vmatprep.subr.bf16.mxu0 0
        %908 = vmatpush1.bf16.msra.mxu0 0
        %909 = vmatprep.subr.bf16.mxu0 0
        %910 = vmatpush1.bf16.msra.mxu0 0
        %911 = vmatprep.subr.bf16.mxu0 0
        %912 = vmatpush1.bf16.msra.mxu0 0
        %913 = vmatprep.subr.bf16.mxu0 0
        %914 = vmatpush1.bf16.msra.mxu0 0
        %915 = vmatprep.subr.bf16.mxu0 0
        %916 = vmatpush1.bf16.msra.mxu0 0
        %917 = vmatprep.subr.bf16.mxu0 0
        %918 = vmatpush1.bf16.msra.mxu0 0
        %919 = vmatprep.subr.bf16.mxu0 0
        %920 = vmatpush1.bf16.msra.mxu0 0
        %921 = vmatprep.subr.bf16.mxu0 0
        %922 = vmatpush1.bf16.msra.mxu0 0
        %923 = vmatprep.subr.bf16.mxu0 0
        %924 = vmatpush1.bf16.msra.mxu0 0
        %925 = vmatprep.mubr.bf16.mxu0 0
        %926 = vmatmul.mubr.bf16.gmra.mrb[0].mxu0 %v888
        %v927 = vpop.f32.mrb[0].mxu0
        %v928 = vadd.f32 0.0, %v927
        %v929 = vpop.f32.mrb[0].mxu0
        %v930 = vpop.f32.mrb[0].mxu0
        %v931 = vpop.f32.mrb[0].mxu0
        %932 = vdwg.mxu0
        %v933 = vrcp.pop %v882
        %v934 = vmul.f32 %v928, %v933
        %935 = vrot.lane.b32.xlu0 %v708, 112
        %v936 = vpop.permute.xlu0 %935
        %937 = vrot.lane.b32.xlu0 %v709, 112
        %v938 = vpop.permute.xlu0 %937
        %v940 = vsel %vm711, %v936, 0
        %v943 = vsel %vm711, %v938, 0
        %945 = vmatprep.subr.bf16.mxu0 0
        %946 = vmatpush1.bf16.xpose.msra.mxu0 %v943
        %947 = vmatprep.subr.bf16.mxu0 0
        %948 = vmatpush1.bf16.xpose.msra.mxu0 0
        %949 = vmatprep.subr.bf16.mxu0 0
        %950 = vmatpush1.bf16.xpose.msra.mxu0 0
        %951 = vmatprep.subr.bf16.mxu0 0
        %952 = vmatpush1.bf16.xpose.msra.mxu0 0
        %953 = vmatprep.subr.bf16.mxu0 0
        %954 = vmatpush1.bf16.xpose.msra.mxu0 0
        %955 = vmatprep.subr.bf16.mxu0 0
        %956 = vmatpush1.bf16.xpose.msra.mxu0 0
        %957 = vmatprep.subr.bf16.mxu0 0
        %958 = vmatpush1.bf16.xpose.msra.mxu0 0
        %959 = vmatprep.subr.bf16.mxu0 0
        %960 = vmatpush1.bf16.xpose.msra.mxu0 0
        %961 = vmatprep.subr.bf16.mxu0 0
        %962 = vmatpush1.bf16.xpose.msra.mxu0 0
        %963 = vmatprep.subr.bf16.mxu0 0
        %964 = vmatpush1.bf16.xpose.msra.mxu0 0
        %965 = vmatprep.subr.bf16.mxu0 0
        %966 = vmatpush1.bf16.xpose.msra.mxu0 0
        %967 = vmatprep.subr.bf16.mxu0 0
        %968 = vmatpush1.bf16.xpose.msra.mxu0 0
        %969 = vmatprep.subr.bf16.mxu0 0
        %970 = vmatpush1.bf16.xpose.msra.mxu0 0
        %971 = vmatprep.subr.bf16.mxu0 0
        %972 = vmatpush1.bf16.xpose.msra.mxu0 0
        %973 = vmatprep.subr.bf16.mxu0 0
        %974 = vmatpush1.bf16.xpose.msra.mxu0 0
        %975 = vmatprep.subr.bf16.mxu0 0
        %976 = vmatpush1.bf16.xpose.msra.mxu0 0
        %977 = vmatprep.mubr.bf16.mxu0 0
        %978 = vmatmul.mubr.bf16.gmra.mrb[0].mxu0 %v940
        %v979 = vpop.f32.mrb[0].mxu0
        %v980 = vadd.f32 0.0, %v979
        %v981 = vpop.f32.mrb[0].mxu0
        %v982 = vpop.f32.mrb[0].mxu0
        %v983 = vpop.f32.mrb[0].mxu0
        %984 = vdwg.mxu0
        %v985 = vsel %vm758, -1e+09, %v980
        %v986 = vmul.f32 %v985, 0.35355338
        %v987 = vsel %vm711, %v986, -inf
        %988 = vmax.xlane.f32.xlu0 %v987
        %v989 = vpop.xlane.xlu0 %988
        %v990 = vsub.f32 %v986, %v989
        %v991 = vmul.f32 %v990, 1.442695
        %v992 = vpow.pop %v991
        %v993 = vsel %vm711, %v992, 0.0
        %994 = vadd.xlane.f32.xlu0 %v993
        %v995 = vpop.xlane.xlu0 %994
        %v996 = vpack.c.bf16 %v992, %v992
        %997 = vrot.lane.b32.xlu0 %v710, 112
        %v998 = vpop.permute.xlu0 %997
        %v1000 = vsel %vm711, %v996, 0
        %v1003 = vsel %vm774, %v998, 0
        %1005 = vmatprep.subr.bf16.mxu0 0
        %1006 = vmatpush1.bf16.msra.mxu0 %v1003
        %1007 = vmatprep.subr.bf16.mxu0 0
        %1008 = vmatpush1.bf16.msra.mxu0 0
        %1009 = vmatprep.subr.bf16.mxu0 0
        %1010 = vmatpush1.bf16.msra.mxu0 0
        %1011 = vmatprep.subr.bf16.mxu0 0
        %1012 = vmatpush1.bf16.msra.mxu0 0
        %1013 = vmatprep.subr.bf16.mxu0 0
        %1014 = vmatpush1.bf16.msra.mxu0 0
        %1015 = vmatprep.subr.bf16.mxu0 0
        %1016 = vmatpush1.bf16.msra.mxu0 0
        %1017 = vmatprep.subr.bf16.mxu0 0
        %1018 = vmatpush1.bf16.msra.mxu0 0
        %1019 = vmatprep.subr.bf16.mxu0 0
        %1020 = vmatpush1.bf16.msra.mxu0 0
        %1021 = vmatprep.subr.bf16.mxu0 0
        %1022 = vmatpush1.bf16.msra.mxu0 0
        %1023 = vmatprep.subr.bf16.mxu0 0
        %1024 = vmatpush1.bf16.msra.mxu0 0
        %1025 = vmatprep.subr.bf16.mxu0 0
        %1026 = vmatpush1.bf16.msra.mxu0 0
        %1027 = vmatprep.subr.bf16.mxu0 0
        %1028 = vmatpush1.bf16.msra.mxu0 0
        %1029 = vmatprep.subr.bf16.mxu0 0
        %1030 = vmatpush1.bf16.msra.mxu0 0
        %1031 = vmatprep.subr.bf16.mxu0 0
        %1032 = vmatpush1.bf16.msra.mxu0 0
        %1033 = vmatprep.subr.bf16.mxu0 0
        %1034 = vmatpush1.bf16.msra.mxu0 0
        %1035 = vmatprep.subr.bf16.mxu0 0
        %1036 = vmatpush1.bf16.msra.mxu0 0
        %1037 = vmatprep.mubr.bf16.mxu0 0
        %1038 = vmatmul.mubr.bf16.gmra.mrb[0].mxu0 %v1000
        %v1039 = vpop.f32.mrb[0].mxu0
        %v1040 = vadd.f32 0.0, %v1039
        %v1041 = vpop.f32.mrb[0].mxu0
        %v1042 = vpop.f32.mrb[0].mxu0
        %v1043 = vpop.f32.mrb[0].mxu0
        %1044 = vdwg.mxu0
        %v1045 = vrcp.pop %v995
        %v1046 = vmul.f32 %v1040, %v1045
        %1047 = vrot.lane.b32.xlu0 %v708, 104
        %v1048 = vpop.permute.xlu0 %1047
        %1049 = vrot.lane.b32.xlu0 %v709, 104
        %v1050 = vpop.permute.xlu0 %1049
        %v1052 = vsel %vm711, %v1048, 0
        %v1055 = vsel %vm711, %v1050, 0
        %1057 = vmatprep.subr.bf16.mxu0 0
        %1058 = vmatpush1.bf16.xpose.msra.mxu0 %v1055
        %1059 = vmatprep.subr.bf16.mxu0 0
        %1060 = vmatpush1.bf16.xpose.msra.mxu0 0
        %1061 = vmatprep.subr.bf16.mxu0 0
        %1062 = vmatpush1.bf16.xpose.msra.mxu0 0
        %1063 = vmatprep.subr.bf16.mxu0 0
        %1064 = vmatpush1.bf16.xpose.msra.mxu0 0
        %1065 = vmatprep.subr.bf16.mxu0 0
        %1066 = vmatpush1.bf16.xpose.msra.mxu0 0
        %1067 = vmatprep.subr.bf16.mxu0 0
        %1068 = vmatpush1.bf16.xpose.msra.mxu0 0
        %1069 = vmatprep.subr.bf16.mxu0 0
        %1070 = vmatpush1.bf16.xpose.msra.mxu0 0
        %1071 = vmatprep.subr.bf16.mxu0 0
        %1072 = vmatpush1.bf16.xpose.msra.mxu0 0
        %1073 = vmatprep.subr.bf16.mxu0 0
        %1074 = vmatpush1.bf16.xpose.msra.mxu0 0
        %1075 = vmatprep.subr.bf16.mxu0 0
        %1076 = vmatpush1.bf16.xpose.msra.mxu0 0
        %1077 = vmatprep.subr.bf16.mxu0 0
        %1078 = vmatpush1.bf16.xpose.msra.mxu0 0
        %1079 = vmatprep.subr.bf16.mxu0 0
        %1080 = vmatpush1.bf16.xpose.msra.mxu0 0
        %1081 = vmatprep.subr.bf16.mxu0 0
        %1082 = vmatpush1.bf16.xpose.msra.mxu0 0
        %1083 = vmatprep.subr.bf16.mxu0 0
        %1084 = vmatpush1.bf16.xpose.msra.mxu0 0
        %1085 = vmatprep.subr.bf16.mxu0 0
        %1086 = vmatpush1.bf16.xpose.msra.mxu0 0
        %1087 = vmatprep.subr.bf16.mxu0 0
        %1088 = vmatpush1.bf16.xpose.msra.mxu0 0
        %1089 = vmatprep.mubr.bf16.mxu0 0
        %1090 = vmatmul.mubr.bf16.gmra.mrb[0].mxu0 %v1052
        %v1091 = vpop.f32.mrb[0].mxu0
        %v1092 = vadd.f32 0.0, %v1091
        %v1093 = vpop.f32.mrb[0].mxu0
        %v1094 = vpop.f32.mrb[0].mxu0
        %v1095 = vpop.f32.mrb[0].mxu0
        %1096 = vdwg.mxu0
        %v1097 = vsel %vm758, -1e+09, %v1092
        %v1098 = vmul.f32 %v1097, 0.35355338
        %v1099 = vsel %vm711, %v1098, -inf
        %1100 = vmax.xlane.f32.xlu0 %v1099
        %v1101 = vpop.xlane.xlu0 %1100
        %v1102 = vsub.f32 %v1098, %v1101
        %v1103 = vmul.f32 %v1102, 1.442695
        %v1104 = vpow.pop %v1103
        %v1105 = vsel %vm711, %v1104, 0.0
        %1106 = vadd.xlane.f32.xlu0 %v1105
        %v1107 = vpop.xlane.xlu0 %1106
        %v1108 = vpack.c.bf16 %v1104, %v1104
        %1109 = vrot.lane.b32.xlu0 %v710, 104
        %v1110 = vpop.permute.xlu0 %1109
        %v1112 = vsel %vm711, %v1108, 0
        %v1115 = vsel %vm774, %v1110, 0
        %1117 = vmatprep.subr.bf16.mxu0 0
        %1118 = vmatpush1.bf16.msra.mxu0 %v1115
        %1119 = vmatprep.subr.bf16.mxu0 0
        %1120 = vmatpush1.bf16.msra.mxu0 0
        %1121 = vmatprep.subr.bf16.mxu0 0
        %1122 = vmatpush1.bf16.msra.mxu0 0
        %1123 = vmatprep.subr.bf16.mxu0 0
        %1124 = vmatpush1.bf16.msra.mxu0 0
        %1125 = vmatprep.subr.bf16.mxu0 0
        %1126 = vmatpush1.bf16.msra.mxu0 0
        %1127 = vmatprep.subr.bf16.mxu0 0
        %1128 = vmatpush1.bf16.msra.mxu0 0
        %1129 = vmatprep.subr.bf16.mxu0 0
        %1130 = vmatpush1.bf16.msra.mxu0 0
        %1131 = vmatprep.subr.bf16.mxu0 0
        %1132 = vmatpush1.bf16.msra.mxu0 0
        %1133 = vmatprep.subr.bf16.mxu0 0
        %1134 = vmatpush1.bf16.msra.mxu0 0
        %1135 = vmatprep.subr.bf16.mxu0 0
        %1136 = vmatpush1.bf16.msra.mxu0 0
        %1137 = vmatprep.subr.bf16.mxu0 0
        %1138 = vmatpush1.bf16.msra.mxu0 0
        %1139 = vmatprep.subr.bf16.mxu0 0
        %1140 = vmatpush1.bf16.msra.mxu0 0
        %1141 = vmatprep.subr.bf16.mxu0 0
        %1142 = vmatpush1.bf16.msra.mxu0 0
        %1143 = vmatprep.subr.bf16.mxu0 0
        %1144 = vmatpush1.bf16.msra.mxu0 0
        %1145 = vmatprep.subr.bf16.mxu0 0
        %1146 = vmatpush1.bf16.msra.mxu0 0
        %1147 = vmatprep.subr.bf16.mxu0 0
        %1148 = vmatpush1.bf16.msra.mxu0 0
        %1149 = vmatprep.mubr.bf16.mxu0 0
        %1150 = vmatmul.mubr.bf16.gmra.mrb[0].mxu0 %v1112
        %v1151 = vpop.f32.mrb[0].mxu0
        %v1152 = vadd.f32 0.0, %v1151
        %v1153 = vpop.f32.mrb[0].mxu0
        %v1154 = vpop.f32.mrb[0].mxu0
        %v1155 = vpop.f32.mrb[0].mxu0
        %1156 = vdwg.mxu0
        %v1157 = vrcp.pop %v1107
        %v1158 = vmul.f32 %v1152, %v1157
        %1160 = vrot.lane.b32.xlu0 %v934, 8
        %v1161 = vpop.permute.xlu0 %1160
        %1164 = vrot.lane.b32.xlu0 %v1046, 16
        %v1165 = vpop.permute.xlu0 %1164
        %1168 = vrot.lane.b32.xlu0 %v1158, 24
        %v1169 = vpop.permute.xlu0 %1168
        %v1171 = vsel %vm711, %v819, %v1161
        %vm1172 = vcmask 130048
        %v1173 = vsel %vm1172, %v1171, %v1165
        %vm1174 = vcmask 195584
        %v1175 = vsel %vm1174, %v1173, %v1169
        %v1176 = vpack.c.bf16 %v1175, %v1175
        %v1177 = vlaneseq
        %v1178 = vshrl.u32 %v1177, 7
        %v1179 = vsub.s32 0, %v1178
        %v1180 = vrot.slane %v534, %v1179
        %v1185 = vunpack.c.l.b16 %v530
        %v1186 = vunpack.c.l.b16 %v531
        %v1187 = vunpack.c.l.b16 %v532
        %v1188 = vunpack.c.l.b16 %v533
        %v1189 = vpack.c.b16 %v1186, %v1185
        %v1190 = vpack.c.b16 %v1188, %v1187
        %v1194 = vsel %vm552, %v1176, 0
        %1196 = vmatprep.subr.bf16.mxu0 0
        %1197 = vmatpush1.bf16.msra.mxu0 %v1189
        %1198 = vmatprep.subr.bf16.mxu0 0
        %1199 = vmatpush1.bf16.msra.mxu0 %v1190
        %1200 = vmatprep.subr.bf16.mxu0 0
        %1201 = vmatpush1.bf16.msra.mxu0 0
        %1202 = vmatprep.subr.bf16.mxu0 0
        %1203 = vmatpush1.bf16.msra.mxu0 0
        %1204 = vmatprep.subr.bf16.mxu0 0
        %1205 = vmatpush1.bf16.msra.mxu0 0
        %1206 = vmatprep.subr.bf16.mxu0 0
        %1207 = vmatpush1.bf16.msra.mxu0 0
        %1208 = vmatprep.subr.bf16.mxu0 0
        %1209 = vmatpush1.bf16.msra.mxu0 0
        %1210 = vmatprep.subr.bf16.mxu0 0
        %1211 = vmatpush1.bf16.msra.mxu0 0
        %1212 = vmatprep.subr.bf16.mxu0 0
        %1213 = vmatpush1.bf16.msra.mxu0 0
        %1214 = vmatprep.subr.bf16.mxu0 0
        %1215 = vmatpush1.bf16.msra.mxu0 0
        %1216 = vmatprep.subr.bf16.mxu0 0
        %1217 = vmatpush1.bf16.msra.mxu0 0
        %1218 = vmatprep.subr.bf16.mxu0 0
        %1219 = vmatpush1.bf16.msra.mxu0 0
        %1220 = vmatprep.subr.bf16.mxu0 0
        %1221 = vmatpush1.bf16.msra.mxu0 0
        %1222 = vmatprep.subr.bf16.mxu0 0
        %1223 = vmatpush1.bf16.msra.mxu0 0
        %1224 = vmatprep.subr.bf16.mxu0 0
        %1225 = vmatpush1.bf16.msra.mxu0 0
        %1226 = vmatprep.subr.bf16.mxu0 0
        %1227 = vmatpush1.bf16.msra.mxu0 0
        %1228 = vmatprep.mubr.bf16.mxu0 0
        %1229 = vmatmul.mubr.bf16.gmra.mrb[0].mxu0 %v1194
        %v1230 = vpop.f32.mrb[0].mxu0
        %v1231 = vadd.f32 %v1180, %v1230
        %v1232 = vpop.f32.mrb[0].mxu0
        %v1233 = vpop.f32.mrb[0].mxu0
        %v1234 = vpop.f32.mrb[0].mxu0
        %1235 = vdwg.mxu0
        %v1236 = vadd.f32 %v507, %v1231
        %v1237 = vld [vmem:[#allocation8 + $0x4] sm:$0x1]
        %v1238 = vld [vmem:[#allocation8 + $0x5] sm:$0x1]
        %v1239 = vsel %vm552, %v1236, 0.0
        %1240 = vadd.xlane.f32.xlu0 %v1239
        %v1241 = vpop.xlane.xlu0 %1240
        %v1242 = vrcp.pop 32.0
        %v1243 = vmul.f32 %v1241, %v1242
        %v1244 = vsub.f32 %v1236, %v1243
        %v1245 = vmul.f32 %v1244, %v1244
        %v1246 = vsel %vm552, %v1245, 0.0
        %1247 = vadd.xlane.f32.xlu0 %v1246
        %v1248 = vpop.xlane.xlu0 %1247
        %v1249 = vmul.f32 %v1248, %v1242
        %v1250 = vadd.f32 %v1249, 1e-05
        %v1251 = vrsqrt.pop %v1250
        %v1252 = vmul.f32 %v1244, %v1251
        %v1253 = vlaneseq
        %v1254 = vshrl.u32 %v1253, 7
        %v1255 = vsub.s32 0, %v1254
        %v1256 = vrot.slane %v1237, %v1255
        %v1257 = vmul.f32 %v1252, %v1256
        %v1258 = vlaneseq
        %v1259 = vshrl.u32 %v1258, 7
        %v1260 = vsub.s32 0, %v1259
        %v1261 = vrot.slane %v1238, %v1260
        %v1262 = vadd.f32 %v1257, %v1261
        %s1263 = scalar_lea.vmem [#allocation7], 64
        %v1264 = vld [vmem:[%s1263] sm:$0xf]
        %v1265 = vld [vmem:[%s1263 + $0x4] sm:$0xf]
        %v1266 = vld [vmem:[%s1263 + $0x8] sm:$0xf]
        %v1267 = vld [vmem:[%s1263 + $0xc] sm:$0xf]
        %v1268 = vld [vmem:[#allocation8 + $0x6] sm:$0x1]
        %s1269 = scalar_lea.vmem [#allocation7], 80
        %v1270 = vld [vmem:[%s1269] sm:$0xf]
        %v1271 = vld [vmem:[%s1269 + $0x4] sm:$0xf]
        %v1272 = vld [vmem:[%s1269 + $0x8] sm:$0xf]
        %v1273 = vld [vmem:[%s1269 + $0xc] sm:$0xf]
        %v1274 = vld [vmem:[#allocation8 + $0x7] sm:$0x1]
        %s1275 = scalar_lea.vmem [#allocation7], 96
        %v1276 = vld [vmem:[%s1275] sm:$0xf]
        %v1277 = vld [vmem:[%s1275 + $0x4] sm:$0xf]
        %v1278 = vld [vmem:[%s1275 + $0x8] sm:$0xf]
        %v1279 = vld [vmem:[%s1275 + $0xc] sm:$0xf]
        %v1280 = vld [vmem:[#allocation8 + $0x8] sm:$0x1]
        %s1281 = scalar_lea.vmem [#allocation7], 112
        %v1282 = vld [vmem:[%s1281] sm:$0xf]
        %v1283 = vld [vmem:[%s1281 + $0x4] sm:$0xf]
        %v1284 = vld [vmem:[%s1281 + $0x8] sm:$0xf]
        %v1285 = vld [vmem:[%s1281 + $0xc] sm:$0xf]
        %v1286 = vld [vmem:[#allocation8 + $0x9] sm:$0x1]
        %v1287 = vpack.c.bf16 %v1262, %v1262
        %v1288 = vlaneseq
        %v1289 = vshrl.u32 %v1288, 7
        %v1290 = vsub.s32 0, %v1289
        %v1291 = vrot.slane %v1268, %v1290
        %v1296 = vunpack.c.l.b16 %v1264
        %v1297 = vunpack.c.l.b16 %v1265
        %v1298 = vunpack.c.l.b16 %v1266
        %v1299 = vunpack.c.l.b16 %v1267
        %v1300 = vpack.c.b16 %v1297, %v1296
        %v1301 = vpack.c.b16 %v1299, %v1298
        %v1305 = vsel %vm552, %v1287, 0
        %1307 = vmatprep.subr.bf16.mxu0 0
        %1308 = vmatpush1.bf16.msra.mxu0 %v1300
        %1309 = vmatprep.subr.bf16.mxu0 0
        %1310 = vmatpush1.bf16.msra.mxu0 %v1301
        %1311 = vmatprep.subr.bf16.mxu0 0
        %1312 = vmatpush1.bf16.msra.mxu0 0
        %1313 = vmatprep.subr.bf16.mxu0 0
        %1314 = vmatpush1.bf16.msra.mxu0 0
        %1315 = vmatprep.subr.bf16.mxu0 0
        %1316 = vmatpush1.bf16.msra.mxu0 0
        %1317 = vmatprep.subr.bf16.mxu0 0
        %1318 = vmatpush1.bf16.msra.mxu0 0
        %1319 = vmatprep.subr.bf16.mxu0 0
        %1320 = vmatpush1.bf16.msra.mxu0 0
        %1321 = vmatprep.subr.bf16.mxu0 0
        %1322 = vmatpush1.bf16.msra.mxu0 0
        %1323 = vmatprep.subr.bf16.mxu0 0
        %1324 = vmatpush1.bf16.msra.mxu0 0
        %1325 = vmatprep.subr.bf16.mxu0 0
        %1326 = vmatpush1.bf16.msra.mxu0 0
        %1327 = vmatprep.subr.bf16.mxu0 0
        %1328 = vmatpush1.bf16.msra.mxu0 0
        %1329 = vmatprep.subr.bf16.mxu0 0
        %1330 = vmatpush1.bf16.msra.mxu0 0
        %1331 = vmatprep.subr.bf16.mxu0 0
        %1332 = vmatpush1.bf16.msra.mxu0 0
        %1333 = vmatprep.subr.bf16.mxu0 0
        %1334 = vmatpush1.bf16.msra.mxu0 0
        %1335 = vmatprep.subr.bf16.mxu0 0
        %1336 = vmatpush1.bf16.msra.mxu0 0
        %1337 = vmatprep.subr.bf16.mxu0 0
        %1338 = vmatpush1.bf16.msra.mxu0 0
        %1339 = vmatprep.mubr.bf16.mxu0 0
        %1340 = vmatmul.mubr.bf16.gmra.mrb[0].mxu0 %v1305
        %v1341 = vpop.f32.mrb[0].mxu0
        %v1342 = vadd.f32 %v1291, %v1341
        %v1343 = vpop.f32.mrb[0].mxu0
        %v1344 = vpop.f32.mrb[0].mxu0
        %v1345 = vpop.f32.mrb[0].mxu0
        %1346 = vdwg.mxu0
        %v1347 = vpack.c.bf16 %v509, %v509
        %v1348 = vlaneseq
        %v1349 = vshrl.u32 %v1348, 7
        %v1350 = vsub.s32 0, %v1349
        %v1351 = vrot.slane %v1274, %v1350
        %v1356 = vunpack.c.l.b16 %v1270
        %v1357 = vunpack.c.l.b16 %v1271
        %v1358 = vunpack.c.l.b16 %v1272
        %v1359 = vunpack.c.l.b16 %v1273
        %v1360 = vpack.c.b16 %v1357, %v1356
        %v1361 = vpack.c.b16 %v1359, %v1358
        %v1365 = vsel %vm552, %v1347, 0
        %1367 = vmatprep.subr.bf16.mxu0 0
        %1368 = vmatpush1.bf16.msra.mxu0 %v1360
        %1369 = vmatprep.subr.bf16.mxu0 0
        %1370 = vmatpush1.bf16.msra.mxu0 %v1361
        %1371 = vmatprep.subr.bf16.mxu0 0
        %1372 = vmatpush1.bf16.msra.mxu0 0
        %1373 = vmatprep.subr.bf16.mxu0 0
        %1374 = vmatpush1.bf16.msra.mxu0 0
        %1375 = vmatprep.subr.bf16.mxu0 0
        %1376 = vmatpush1.bf16.msra.mxu0 0
        %1377 = vmatprep.subr.bf16.mxu0 0
        %1378 = vmatpush1.bf16.msra.mxu0 0
        %1379 = vmatprep.subr.bf16.mxu0 0
        %1380 = vmatpush1.bf16.msra.mxu0 0
        %1381 = vmatprep.subr.bf16.mxu0 0
        %1382 = vmatpush1.bf16.msra.mxu0 0
        %1383 = vmatprep.subr.bf16.mxu0 0
        %1384 = vmatpush1.bf16.msra.mxu0 0
        %1385 = vmatprep.subr.bf16.mxu0 0
        %1386 = vmatpush1.bf16.msra.mxu0 0
        %1387 = vmatprep.subr.bf16.mxu0 0
        %1388 = vmatpush1.bf16.msra.mxu0 0
        %1389 = vmatprep.subr.bf16.mxu0 0
        %1390 = vmatpush1.bf16.msra.mxu0 0
        %1391 = vmatprep.subr.bf16.mxu0 0
        %1392 = vmatpush1.bf16.msra.mxu0 0
        %1393 = vmatprep.subr.bf16.mxu0 0
        %1394 = vmatpush1.bf16.msra.mxu0 0
        %1395 = vmatprep.subr.bf16.mxu0 0
        %1396 = vmatpush1.bf16.msra.mxu0 0
        %1397 = vmatprep.subr.bf16.mxu0 0
        %1398 = vmatpush1.bf16.msra.mxu0 0
        %1399 = vmatprep.mubr.bf16.mxu0 0
        %1400 = vmatmul.mubr.bf16.gmra.mrb[0].mxu0 %v1365
        %v1401 = vpop.f32.mrb[0].mxu0
        %v1402 = vadd.f32 %v1351, %v1401
        %v1403 = vpop.f32.mrb[0].mxu0
        %v1404 = vpop.f32.mrb[0].mxu0
        %v1405 = vpop.f32.mrb[0].mxu0
        %1406 = vdwg.mxu0
        %v1407 = vpack.c.bf16 %v508, %v508
        %v1408 = vlaneseq
        %v1409 = vshrl.u32 %v1408, 7
        %v1410 = vsub.s32 0, %v1409
        %v1411 = vrot.slane %v1280, %v1410
        %v1416 = vunpack.c.l.b16 %v1276
        %v1417 = vunpack.c.l.b16 %v1277
        %v1418 = vunpack.c.l.b16 %v1278
        %v1419 = vunpack.c.l.b16 %v1279
        %v1420 = vpack.c.b16 %v1417, %v1416
        %v1421 = vpack.c.b16 %v1419, %v1418
        %v1425 = vsel %vm552, %v1407, 0
        %1427 = vmatprep.subr.bf16.mxu0 0
        %1428 = vmatpush1.bf16.msra.mxu0 %v1420
        %1429 = vmatprep.subr.bf16.mxu0 0
        %1430 = vmatpush1.bf16.msra.mxu0 %v1421
        %1431 = vmatprep.subr.bf16.mxu0 0
        %1432 = vmatpush1.bf16.msra.mxu0 0
        %1433 = vmatprep.subr.bf16.mxu0 0
        %1434 = vmatpush1.bf16.msra.mxu0 0
        %1435 = vmatprep.subr.bf16.mxu0 0
        %1436 = vmatpush1.bf16.msra.mxu0 0
        %1437 = vmatprep.subr.bf16.mxu0 0
        %1438 = vmatpush1.bf16.msra.mxu0 0
        %1439 = vmatprep.subr.bf16.mxu0 0
        %1440 = vmatpush1.bf16.msra.mxu0 0
        %1441 = vmatprep.subr.bf16.mxu0 0
        %1442 = vmatpush1.bf16.msra.mxu0 0
        %1443 = vmatprep.subr.bf16.mxu0 0
        %1444 = vmatpush1.bf16.msra.mxu0 0
        %1445 = vmatprep.subr.bf16.mxu0 0
        %1446 = vmatpush1.bf16.msra.mxu0 0
        %1447 = vmatprep.subr.bf16.mxu0 0
        %1448 = vmatpush1.bf16.msra.mxu0 0
        %1449 = vmatprep.subr.bf16.mxu0 0
        %1450 = vmatpush1.bf16.msra.mxu0 0
        %1451 = vmatprep.subr.bf16.mxu0 0
        %1452 = vmatpush1.bf16.msra.mxu0 0
        %1453 = vmatprep.subr.bf16.mxu0 0
        %1454 = vmatpush1.bf16.msra.mxu0 0
        %1455 = vmatprep.subr.bf16.mxu0 0
        %1456 = vmatpush1.bf16.msra.mxu0 0
        %1457 = vmatprep.subr.bf16.mxu0 0
        %1458 = vmatpush1.bf16.msra.mxu0 0
        %1459 = vmatprep.mubr.bf16.mxu0 0
        %1460 = vmatmul.mubr.bf16.gmra.mrb[0].mxu0 %v1425
        %v1461 = vpop.f32.mrb[0].mxu0
        %v1462 = vadd.f32 %v1411, %v1461
        %v1463 = vpop.f32.mrb[0].mxu0
        %v1464 = vpop.f32.mrb[0].mxu0
        %v1465 = vpop.f32.mrb[0].mxu0
        %1466 = vdwg.mxu0
        %v1467 = vpack.c.bf16 %v1342, %v1342
        %v1468 = vpack.c.bf16 %v1402, %v1402
        %v1469 = vpack.c.bf16 %v1462, %v1462
        %v1471 = vsel %vm711, %v1467, 0
        %v1474 = vsel %vm711, %v1468, 0
        %1476 = vmatprep.subr.bf16.mxu0 0
        %1477 = vmatpush1.bf16.xpose.msra.mxu0 %v1474
        %1478 = vmatprep.subr.bf16.mxu0 0
        %1479 = vmatpush1.bf16.xpose.msra.mxu0 0
        %1480 = vmatprep.subr.bf16.mxu0 0
        %1481 = vmatpush1.bf16.xpose.msra.mxu0 0
        %1482 = vmatprep.subr.bf16.mxu0 0
        %1483 = vmatpush1.bf16.xpose.msra.mxu0 0
        %1484 = vmatprep.subr.bf16.mxu0 0
        %1485 = vmatpush1.bf16.xpose.msra.mxu0 0
        %1486 = vmatprep.subr.bf16.mxu0 0
        %1487 = vmatpush1.bf16.xpose.msra.mxu0 0
        %1488 = vmatprep.subr.bf16.mxu0 0
        %1489 = vmatpush1.bf16.xpose.msra.mxu0 0
        %1490 = vmatprep.subr.bf16.mxu0 0
        %1491 = vmatpush1.bf16.xpose.msra.mxu0 0
        %1492 = vmatprep.subr.bf16.mxu0 0
        %1493 = vmatpush1.bf16.xpose.msra.mxu0 0
        %1494 = vmatprep.subr.bf16.mxu0 0
        %1495 = vmatpush1.bf16.xpose.msra.mxu0 0
        %1496 = vmatprep.subr.bf16.mxu0 0
        %1497 = vmatpush1.bf16.xpose.msra.mxu0 0
        %1498 = vmatprep.subr.bf16.mxu0 0
        %1499 = vmatpush1.bf16.xpose.msra.mxu0 0
        %1500 = vmatprep.subr.bf16.mxu0 0
        %1501 = vmatpush1.bf16.xpose.msra.mxu0 0
        %1502 = vmatprep.subr.bf16.mxu0 0
        %1503 = vmatpush1.bf16.xpose.msra.mxu0 0
        %1504 = vmatprep.subr.bf16.mxu0 0
        %1505 = vmatpush1.bf16.xpose.msra.mxu0 0
        %1506 = vmatprep.subr.bf16.mxu0 0
        %1507 = vmatpush1.bf16.xpose.msra.mxu0 0
        %1508 = vmatprep.mubr.bf16.mxu0 0
        %1509 = vmatmul.mubr.bf16.gmra.mrb[0].mxu0 %v1471
        %v1510 = vpop.f32.mrb[0].mxu0
        %v1511 = vadd.f32 0.0, %v1510
        %v1512 = vpop.f32.mrb[0].mxu0
        %v1513 = vpop.f32.mrb[0].mxu0
        %v1514 = vpop.f32.mrb[0].mxu0
        %1515 = vdwg.mxu0
        %vm1516 = vcmp.eq.s32.totalorder %v511, 0
        %v1517 = vsel %vm1516, -1e+09, %v1511
        %v1518 = vmul.f32 %v1517, 0.35355338
        %v1519 = vsel %vm711, %v1518, -inf
        %1520 = vmax.xlane.f32.xlu0 %v1519
        %v1521 = vpop.xlane.xlu0 %1520
        %v1522 = vsub.f32 %v1518, %v1521
        %v1523 = vmul.f32 %v1522, 1.442695
        %v1524 = vpow.pop %v1523
        %v1525 = vsel %vm711, %v1524, 0.0
        %1526 = vadd.xlane.f32.xlu0 %v1525
        %v1527 = vpop.xlane.xlu0 %1526
        %v1528 = vpack.c.bf16 %v1524, %v1524
        %v1530 = vsel %vm711, %v1528, 0
        %v1533 = vsel %vm774, %v1469, 0
        %1535 = vmatprep.subr.bf16.mxu0 0
        %1536 = vmatpush1.bf16.msra.mxu0 %v1533
        %1537 = vmatprep.subr.bf16.mxu0 0
        %1538 = vmatpush1.bf16.msra.mxu0 0
        %1539 = vmatprep.subr.bf16.mxu0 0
        %1540 = vmatpush1.bf16.msra.mxu0 0
        %1541 = vmatprep.subr.bf16.mxu0 0
        %1542 = vmatpush1.bf16.msra.mxu0 0
        %1543 = vmatprep.subr.bf16.mxu0 0
        %1544 = vmatpush1.bf16.msra.mxu0 0
        %1545 = vmatprep.subr.bf16.mxu0 0
        %1546 = vmatpush1.bf16.msra.mxu0 0
        %1547 = vmatprep.subr.bf16.mxu0 0
        %1548 = vmatpush1.bf16.msra.mxu0 0
        %1549 = vmatprep.subr.bf16.mxu0 0
        %1550 = vmatpush1.bf16.msra.mxu0 0
        %1551 = vmatprep.subr.bf16.mxu0 0
        %1552 = vmatpush1.bf16.msra.mxu0 0
        %1553 = vmatprep.subr.bf16.mxu0 0
        %1554 = vmatpush1.bf16.msra.mxu0 0
        %1555 = vmatprep.subr.bf16.mxu0 0
        %1556 = vmatpush1.bf16.msra.mxu0 0
        %1557 = vmatprep.subr.bf16.mxu0 0
        %1558 = vmatpush1.bf16.msra.mxu0 0
        %1559 = vmatprep.subr.bf16.mxu0 0
        %1560 = vmatpush1.bf16.msra.mxu0 0
        %1561 = vmatprep.subr.bf16.mxu0 0
        %1562 = vmatpush1.bf16.msra.mxu0 0
        %1563 = vmatprep.subr.bf16.mxu0 0
        %1564 = vmatpush1.bf16.msra.mxu0 0
        %1565 = vmatprep.subr.bf16.mxu0 0
        %1566 = vmatpush1.bf16.msra.mxu0 0
        %1567 = vmatprep.mubr.bf16.mxu0 0
        %1568 = vmatmul.mubr.bf16.gmra.mrb[0].mxu0 %v1530
        %v1569 = vpop.f32.mrb[0].mxu0
        %v1570 = vadd.f32 0.0, %v1569
        %v1571 = vpop.f32.mrb[0].mxu0
        %v1572 = vpop.f32.mrb[0].mxu0
        %v1573 = vpop.f32.mrb[0].mxu0
        %1574 = vdwg.mxu0
        %v1575 = vrcp.pop %v1527
        %v1576 = vmul.f32 %v1570, %v1575
        %1578 = vrot.lane.b32.xlu0 %v1467, 120
        %v1579 = vpop.permute.xlu0 %1578
        %1581 = vrot.lane.b32.xlu0 %v1468, 120
        %v1582 = vpop.permute.xlu0 %1581
        %v1584 = vsel %vm711, %v1579, 0
        %v1587 = vsel %vm711, %v1582, 0
        %1589 = vmatprep.subr.bf16.mxu0 0
        %1590 = vmatpush1.bf16.xpose.msra.mxu0 %v1587
        %1591 = vmatprep.subr.bf16.mxu0 0
        %1592 = vmatpush1.bf16.xpose.msra.mxu0 0
        %1593 = vmatprep.subr.bf16.mxu0 0
        %1594 = vmatpush1.bf16.xpose.msra.mxu0 0
        %1595 = vmatprep.subr.bf16.mxu0 0
        %1596 = vmatpush1.bf16.xpose.msra.mxu0 0
        %1597 = vmatprep.subr.bf16.mxu0 0
        %1598 = vmatpush1.bf16.xpose.msra.mxu0 0
        %1599 = vmatprep.subr.bf16.mxu0 0
        %1600 = vmatpush1.bf16.xpose.msra.mxu0 0
        %1601 = vmatprep.subr.bf16.mxu0 0
        %1602 = vmatpush1.bf16.xpose.msra.mxu0 0
        %1603 = vmatprep.subr.bf16.mxu0 0
        %1604 = vmatpush1.bf16.xpose.msra.mxu0 0
        %1605 = vmatprep.subr.bf16.mxu0 0
        %1606 = vmatpush1.bf16.xpose.msra.mxu0 0
        %1607 = vmatprep.subr.bf16.mxu0 0
        %1608 = vmatpush1.bf16.xpose.msra.mxu0 0
        %1609 = vmatprep.subr.bf16.mxu0 0
        %1610 = vmatpush1.bf16.xpose.msra.mxu0 0
        %1611 = vmatprep.subr.bf16.mxu0 0
        %1612 = vmatpush1.bf16.xpose.msra.mxu0 0
        %1613 = vmatprep.subr.bf16.mxu0 0
        %1614 = vmatpush1.bf16.xpose.msra.mxu0 0
        %1615 = vmatprep.subr.bf16.mxu0 0
        %1616 = vmatpush1.bf16.xpose.msra.mxu0 0
        %1617 = vmatprep.subr.bf16.mxu0 0
        %1618 = vmatpush1.bf16.xpose.msra.mxu0 0
        %1619 = vmatprep.subr.bf16.mxu0 0
        %1620 = vmatpush1.bf16.xpose.msra.mxu0 0
        %1621 = vmatprep.mubr.bf16.mxu0 0
        %1622 = vmatmul.mubr.bf16.gmra.mrb[0].mxu0 %v1584
        %v1623 = vpop.f32.mrb[0].mxu0
        %v1624 = vadd.f32 0.0, %v1623
        %v1625 = vpop.f32.mrb[0].mxu0
        %v1626 = vpop.f32.mrb[0].mxu0
        %v1627 = vpop.f32.mrb[0].mxu0
        %1628 = vdwg.mxu0
        %v1629 = vsel %vm1516, -1e+09, %v1624
        %v1630 = vmul.f32 %v1629, 0.35355338
        %v1631 = vsel %vm711, %v1630, -inf
        %1632 = vmax.xlane.f32.xlu0 %v1631
        %v1633 = vpop.xlane.xlu0 %1632
        %v1634 = vsub.f32 %v1630, %v1633
        %v1635 = vmul.f32 %v1634, 1.442695
        %v1636 = vpow.pop %v1635
        %v1637 = vsel %vm711, %v1636, 0.0
        %1638 = vadd.xlane.f32.xlu0 %v1637
        %v1639 = vpop.xlane.xlu0 %1638
        %v1640 = vpack.c.bf16 %v1636, %v1636
        %1642 = vrot.lane.b32.xlu0 %v1469, 120
        %v1643 = vpop.permute.xlu0 %1642
        %v1645 = vsel %vm711, %v1640, 0
        %v1648 = vsel %vm774, %v1643, 0
        %1650 = vmatprep.subr.bf16.mxu0 0
        %1651 = vmatpush1.bf16.msra.mxu0 %v1648
        %1652 = vmatprep.subr.bf16.mxu0 0
        %1653 = vmatpush1.bf16.msra.mxu0 0
        %1654 = vmatprep.subr.bf16.mxu0 0
        %1655 = vmatpush1.bf16.msra.mxu0 0
        %1656 = vmatprep.subr.bf16.mxu0 0
        %1657 = vmatpush1.bf16.msra.mxu0 0
        %1658 = vmatprep.subr.bf16.mxu0 0
        %1659 = vmatpush1.bf16.msra.mxu0 0
        %1660 = vmatprep.subr.bf16.mxu0 0
        %1661 = vmatpush1.bf16.msra.mxu0 0
        %1662 = vmatprep.subr.bf16.mxu0 0
        %1663 = vmatpush1.bf16.msra.mxu0 0
        %1664 = vmatprep.subr.bf16.mxu0 0
        %1665 = vmatpush1.bf16.msra.mxu0 0
        %1666 = vmatprep.subr.bf16.mxu0 0
        %1667 = vmatpush1.bf16.msra.mxu0 0
        %1668 = vmatprep.subr.bf16.mxu0 0
        %1669 = vmatpush1.bf16.msra.mxu0 0
        %1670 = vmatprep.subr.bf16.mxu0 0
        %1671 = vmatpush1.bf16.msra.mxu0 0
        %1672 = vmatprep.subr.bf16.mxu0 0
        %1673 = vmatpush1.bf16.msra.mxu0 0
        %1674 = vmatprep.subr.bf16.mxu0 0
        %1675 = vmatpush1.bf16.msra.mxu0 0
        %1676 = vmatprep.subr.bf16.mxu0 0
        %1677 = vmatpush1.bf16.msra.mxu0 0
        %1678 = vmatprep.subr.bf16.mxu0 0
        %1679 = vmatpush1.bf16.msra.mxu0 0
        %1680 = vmatprep.subr.bf16.mxu0 0
        %1681 = vmatpush1.bf16.msra.mxu0 0
        %1682 = vmatprep.mubr.bf16.mxu0 0
        %1683 = vmatmul.mubr.bf16.gmra.mrb[0].mxu0 %v1645
        %v1684 = vpop.f32.mrb[0].mxu0
        %v1685 = vadd.f32 0.0, %v1684
        %v1686 = vpop.f32.mrb[0].mxu0
        %v1687 = vpop.f32.mrb[0].mxu0
        %v1688 = vpop.f32.mrb[0].mxu0
        %1689 = vdwg.mxu0
        %v1690 = vrcp.pop %v1639
        %v1691 = vmul.f32 %v1685, %v1690
        %1692 = vrot.lane.b32.xlu0 %v1467, 112
        %v1693 = vpop.permute.xlu0 %1692
        %1694 = vrot.lane.b32.xlu0 %v1468, 112
        %v1695 = vpop.permute.xlu0 %1694
        %v1697 = vsel %vm711, %v1693, 0
        %v1700 = vsel %vm711, %v1695, 0
        %1702 = vmatprep.subr.bf16.mxu0 0
        %1703 = vmatpush1.bf16.xpose.msra.mxu0 %v1700
        %1704 = vmatprep.subr.bf16.mxu0 0
        %1705 = vmatpush1.bf16.xpose.msra.mxu0 0
        %1706 = vmatprep.subr.bf16.mxu0 0
        %1707 = vmatpush1.bf16.xpose.msra.mxu0 0
        %1708 = vmatprep.subr.bf16.mxu0 0
        %1709 = vmatpush1.bf16.xpose.msra.mxu0 0
        %1710 = vmatprep.subr.bf16.mxu0 0
        %1711 = vmatpush1.bf16.xpose.msra.mxu0 0
        %1712 = vmatprep.subr.bf16.mxu0 0
        %1713 = vmatpush1.bf16.xpose.msra.mxu0 0
        %1714 = vmatprep.subr.bf16.mxu0 0
        %1715 = vmatpush1.bf16.xpose.msra.mxu0 0
        %1716 = vmatprep.subr.bf16.mxu0 0
        %1717 = vmatpush1.bf16.xpose.msra.mxu0 0
        %1718 = vmatprep.subr.bf16.mxu0 0
        %1719 = vmatpush1.bf16.xpose.msra.mxu0 0
        %1720 = vmatprep.subr.bf16.mxu0 0
        %1721 = vmatpush1.bf16.xpose.msra.mxu0 0
        %1722 = vmatprep.subr.bf16.mxu0 0
        %1723 = vmatpush1.bf16.xpose.msra.mxu0 0
        %1724 = vmatprep.subr.bf16.mxu0 0
        %1725 = vmatpush1.bf16.xpose.msra.mxu0 0
        %1726 = vmatprep.subr.bf16.mxu0 0
        %1727 = vmatpush1.bf16.xpose.msra.mxu0 0
        %1728 = vmatprep.subr.bf16.mxu0 0
        %1729 = vmatpush1.bf16.xpose.msra.mxu0 0
        %1730 = vmatprep.subr.bf16.mxu0 0
        %1731 = vmatpush1.bf16.xpose.msra.mxu0 0
        %1732 = vmatprep.subr.bf16.mxu0 0
        %1733 = vmatpush1.bf16.xpose.msra.mxu0 0
        %1734 = vmatprep.mubr.bf16.mxu0 0
        %1735 = vmatmul.mubr.bf16.gmra.mrb[0].mxu0 %v1697
        %v1736 = vpop.f32.mrb[0].mxu0
        %v1737 = vadd.f32 0.0, %v1736
        %v1738 = vpop.f32.mrb[0].mxu0
        %v1739 = vpop.f32.mrb[0].mxu0
        %v1740 = vpop.f32.mrb[0].mxu0
        %1741 = vdwg.mxu0
        %v1742 = vsel %vm1516, -1e+09, %v1737
        %v1743 = vmul.f32 %v1742, 0.35355338
        %v1744 = vsel %vm711, %v1743, -inf
        %1745 = vmax.xlane.f32.xlu0 %v1744
        %v1746 = vpop.xlane.xlu0 %1745
        %v1747 = vsub.f32 %v1743, %v1746
        %v1748 = vmul.f32 %v1747, 1.442695
        %v1749 = vpow.pop %v1748
        %v1750 = vsel %vm711, %v1749, 0.0
        %1751 = vadd.xlane.f32.xlu0 %v1750
        %v1752 = vpop.xlane.xlu0 %1751
        %v1753 = vpack.c.bf16 %v1749, %v1749
        %1754 = vrot.lane.b32.xlu0 %v1469, 112
        %v1755 = vpop.permute.xlu0 %1754
        %v1757 = vsel %vm711, %v1753, 0
        %v1760 = vsel %vm774, %v1755, 0
        %1762 = vmatprep.subr.bf16.mxu0 0
        %1763 = vmatpush1.bf16.msra.mxu0 %v1760
        %1764 = vmatprep.subr.bf16.mxu0 0
        %1765 = vmatpush1.bf16.msra.mxu0 0
        %1766 = vmatprep.subr.bf16.mxu0 0
        %1767 = vmatpush1.bf16.msra.mxu0 0
        %1768 = vmatprep.subr.bf16.mxu0 0
        %1769 = vmatpush1.bf16.msra.mxu0 0
        %1770 = vmatprep.subr.bf16.mxu0 0
        %1771 = vmatpush1.bf16.msra.mxu0 0
        %1772 = vmatprep.subr.bf16.mxu0 0
        %1773 = vmatpush1.bf16.msra.mxu0 0
        %1774 = vmatprep.subr.bf16.mxu0 0
        %1775 = vmatpush1.bf16.msra.mxu0 0
        %1776 = vmatprep.subr.bf16.mxu0 0
        %1777 = vmatpush1.bf16.msra.mxu0 0
        %1778 = vmatprep.subr.bf16.mxu0 0
        %1779 = vmatpush1.bf16.msra.mxu0 0
        %1780 = vmatprep.subr.bf16.mxu0 0
        %1781 = vmatpush1.bf16.msra.mxu0 0
        %1782 = vmatprep.subr.bf16.mxu0 0
        %1783 = vmatpush1.bf16.msra.mxu0 0
        %1784 = vmatprep.subr.bf16.mxu0 0
        %1785 = vmatpush1.bf16.msra.mxu0 0
        %1786 = vmatprep.subr.bf16.mxu0 0
        %1787 = vmatpush1.bf16.msra.mxu0 0
        %1788 = vmatprep.subr.bf16.mxu0 0
        %1789 = vmatpush1.bf16.msra.mxu0 0
        %1790 = vmatprep.subr.bf16.mxu0 0
        %1791 = vmatpush1.bf16.msra.mxu0 0
        %1792 = vmatprep.subr.bf16.mxu0 0
        %1793 = vmatpush1.bf16.msra.mxu0 0
        %1794 = vmatprep.mubr.bf16.mxu0 0
        %1795 = vmatmul.mubr.bf16.gmra.mrb[0].mxu0 %v1757
        %v1796 = vpop.f32.mrb[0].mxu0
        %v1797 = vadd.f32 0.0, %v1796
        %v1798 = vpop.f32.mrb[0].mxu0
        %v1799 = vpop.f32.mrb[0].mxu0
        %v1800 = vpop.f32.mrb[0].mxu0
        %1801 = vdwg.mxu0
        %v1802 = vrcp.pop %v1752
        %v1803 = vmul.f32 %v1797, %v1802
        %1804 = vrot.lane.b32.xlu0 %v1467, 104
        %v1805 = vpop.permute.xlu0 %1804
        %1806 = vrot.lane.b32.xlu0 %v1468, 104
        %v1807 = vpop.permute.xlu0 %1806
        %v1809 = vsel %vm711, %v1805, 0
        %v1812 = vsel %vm711, %v1807, 0
        %1814 = vmatprep.subr.bf16.mxu0 0
        %1815 = vmatpush1.bf16.xpose.msra.mxu0 %v1812
        %1816 = vmatprep.subr.bf16.mxu0 0
        %1817 = vmatpush1.bf16.xpose.msra.mxu0 0
        %1818 = vmatprep.subr.bf16.mxu0 0
        %1819 = vmatpush1.bf16.xpose.msra.mxu0 0
        %1820 = vmatprep.subr.bf16.mxu0 0
        %1821 = vmatpush1.bf16.xpose.msra.mxu0 0
        %1822 = vmatprep.subr.bf16.mxu0 0
        %1823 = vmatpush1.bf16.xpose.msra.mxu0 0
        %1824 = vmatprep.subr.bf16.mxu0 0
        %1825 = vmatpush1.bf16.xpose.msra.mxu0 0
        %1826 = vmatprep.subr.bf16.mxu0 0
        %1827 = vmatpush1.bf16.xpose.msra.mxu0 0
        %1828 = vmatprep.subr.bf16.mxu0 0
        %1829 = vmatpush1.bf16.xpose.msra.mxu0 0
        %1830 = vmatprep.subr.bf16.mxu0 0
        %1831 = vmatpush1.bf16.xpose.msra.mxu0 0
        %1832 = vmatprep.subr.bf16.mxu0 0
        %1833 = vmatpush1.bf16.xpose.msra.mxu0 0
        %1834 = vmatprep.subr.bf16.mxu0 0
        %1835 = vmatpush1.bf16.xpose.msra.mxu0 0
        %1836 = vmatprep.subr.bf16.mxu0 0
        %1837 = vmatpush1.bf16.xpose.msra.mxu0 0
        %1838 = vmatprep.subr.bf16.mxu0 0
        %1839 = vmatpush1.bf16.xpose.msra.mxu0 0
        %1840 = vmatprep.subr.bf16.mxu0 0
        %1841 = vmatpush1.bf16.xpose.msra.mxu0 0
        %1842 = vmatprep.subr.bf16.mxu0 0
        %1843 = vmatpush1.bf16.xpose.msra.mxu0 0
        %1844 = vmatprep.subr.bf16.mxu0 0
        %1845 = vmatpush1.bf16.xpose.msra.mxu0 0
        %1846 = vmatprep.mubr.bf16.mxu0 0
        %1847 = vmatmul.mubr.bf16.gmra.mrb[0].mxu0 %v1809
        %v1848 = vpop.f32.mrb[0].mxu0
        %v1849 = vadd.f32 0.0, %v1848
        %v1850 = vpop.f32.mrb[0].mxu0
        %v1851 = vpop.f32.mrb[0].mxu0
        %v1852 = vpop.f32.mrb[0].mxu0
        %1853 = vdwg.mxu0
        %v1854 = vsel %vm1516, -1e+09, %v1849
        %v1855 = vmul.f32 %v1854, 0.35355338
        %v1856 = vsel %vm711, %v1855, -inf
        %1857 = vmax.xlane.f32.xlu0 %v1856
        %v1858 = vpop.xlane.xlu0 %1857
        %v1859 = vsub.f32 %v1855, %v1858
        %v1860 = vmul.f32 %v1859, 1.442695
        %v1861 = vpow.pop %v1860
        %v1862 = vsel %vm711, %v1861, 0.0
        %1863 = vadd.xlane.f32.xlu0 %v1862
        %v1864 = vpop.xlane.xlu0 %1863
        %v1865 = vpack.c.bf16 %v1861, %v1861
        %1866 = vrot.lane.b32.xlu0 %v1469, 104
        %v1867 = vpop.permute.xlu0 %1866
        %v1869 = vsel %vm711, %v1865, 0
        %v1872 = vsel %vm774, %v1867, 0
        %1874 = vmatprep.subr.bf16.mxu0 0
        %1875 = vmatpush1.bf16.msra.mxu0 %v1872
        %1876 = vmatprep.subr.bf16.mxu0 0
        %1877 = vmatpush1.bf16.msra.mxu0 0
        %1878 = vmatprep.subr.bf16.mxu0 0
        %1879 = vmatpush1.bf16.msra.mxu0 0
        %1880 = vmatprep.subr.bf16.mxu0 0
        %1881 = vmatpush1.bf16.msra.mxu0 0
        %1882 = vmatprep.subr.bf16.mxu0 0
        %1883 = vmatpush1.bf16.msra.mxu0 0
        %1884 = vmatprep.subr.bf16.mxu0 0
        %1885 = vmatpush1.bf16.msra.mxu0 0
        %1886 = vmatprep.subr.bf16.mxu0 0
        %1887 = vmatpush1.bf16.msra.mxu0 0
        %1888 = vmatprep.subr.bf16.mxu0 0
        %1889 = vmatpush1.bf16.msra.mxu0 0
        %1890 = vmatprep.subr.bf16.mxu0 0
        %1891 = vmatpush1.bf16.msra.mxu0 0
        %1892 = vmatprep.subr.bf16.mxu0 0
        %1893 = vmatpush1.bf16.msra.mxu0 0
        %1894 = vmatprep.subr.bf16.mxu0 0
        %1895 = vmatpush1.bf16.msra.mxu0 0
        %1896 = vmatprep.subr.bf16.mxu0 0
        %1897 = vmatpush1.bf16.msra.mxu0 0
        %1898 = vmatprep.subr.bf16.mxu0 0
        %1899 = vmatpush1.bf16.msra.mxu0 0
        %1900 = vmatprep.subr.bf16.mxu0 0
        %1901 = vmatpush1.bf16.msra.mxu0 0
        %1902 = vmatprep.subr.bf16.mxu0 0
        %1903 = vmatpush1.bf16.msra.mxu0 0
        %1904 = vmatprep.subr.bf16.mxu0 0
        %1905 = vmatpush1.bf16.msra.mxu0 0
        %1906 = vmatprep.mubr.bf16.mxu0 0
        %1907 = vmatmul.mubr.bf16.gmra.mrb[0].mxu0 %v1869
        %v1908 = vpop.f32.mrb[0].mxu0
        %v1909 = vadd.f32 0.0, %v1908
        %v1910 = vpop.f32.mrb[0].mxu0
        %v1911 = vpop.f32.mrb[0].mxu0
        %v1912 = vpop.f32.mrb[0].mxu0
        %1913 = vdwg.mxu0
        %v1914 = vrcp.pop %v1864
        %v1915 = vmul.f32 %v1909, %v1914
        %1917 = vrot.lane.b32.xlu0 %v1691, 8
        %v1918 = vpop.permute.xlu0 %1917
        %1921 = vrot.lane.b32.xlu0 %v1803, 16
        %v1922 = vpop.permute.xlu0 %1921
        %1925 = vrot.lane.b32.xlu0 %v1915, 24
        %v1926 = vpop.permute.xlu0 %1925
        %v1928 = vsel %vm711, %v1576, %v1918
        %v1929 = vsel %vm1172, %v1928, %v1922
        %v1930 = vsel %vm1174, %v1929, %v1926
        %v1931 = vpack.c.bf16 %v1930, %v1930
        %v1932 = vlaneseq
        %v1933 = vshrl.u32 %v1932, 7
        %v1934 = vsub.s32 0, %v1933
        %v1935 = vrot.slane %v1286, %v1934
        %v1940 = vunpack.c.l.b16 %v1282
        %v1941 = vunpack.c.l.b16 %v1283
        %v1942 = vunpack.c.l.b16 %v1284
        %v1943 = vunpack.c.l.b16 %v1285
        %v1944 = vpack.c.b16 %v1941, %v1940
        %v1945 = vpack.c.b16 %v1943, %v1942
        %v1949 = vsel %vm552, %v1931, 0
        %1951 = vmatprep.subr.bf16.mxu0 0
        %1952 = vmatpush1.bf16.msra.mxu0 %v1944
        %1953 = vmatprep.subr.bf16.mxu0 0
        %1954 = vmatpush1.bf16.msra.mxu0 %v1945
        %1955 = vmatprep.subr.bf16.mxu0 0
        %1956 = vmatpush1.bf16.msra.mxu0 0
        %1957 = vmatprep.subr.bf16.mxu0 0
        %1958 = vmatpush1.bf16.msra.mxu0 0
        %1959 = vmatprep.subr.bf16.mxu0 0
        %1960 = vmatpush1.bf16.msra.mxu0 0
        %1961 = vmatprep.subr.bf16.mxu0 0
        %1962 = vmatpush1.bf16.msra.mxu0 0
        %1963 = vmatprep.subr.bf16.mxu0 0
        %1964 = vmatpush1.bf16.msra.mxu0 0
        %1965 = vmatprep.subr.bf16.mxu0 0
        %1966 = vmatpush1.bf16.msra.mxu0 0
        %1967 = vmatprep.subr.bf16.mxu0 0
        %1968 = vmatpush1.bf16.msra.mxu0 0
        %1969 = vmatprep.subr.bf16.mxu0 0
        %1970 = vmatpush1.bf16.msra.mxu0 0
        %1971 = vmatprep.subr.bf16.mxu0 0
        %1972 = vmatpush1.bf16.msra.mxu0 0
        %1973 = vmatprep.subr.bf16.mxu0 0
        %1974 = vmatpush1.bf16.msra.mxu0 0
        %1975 = vmatprep.subr.bf16.mxu0 0
        %1976 = vmatpush1.bf16.msra.mxu0 0
        %1977 = vmatprep.subr.bf16.mxu0 0
        %1978 = vmatpush1.bf16.msra.mxu0 0
        %1979 = vmatprep.subr.bf16.mxu0 0
        %1980 = vmatpush1.bf16.msra.mxu0 0
        %1981 = vmatprep.subr.bf16.mxu0 0
        %1982 = vmatpush1.bf16.msra.mxu0 0
        %1983 = vmatprep.mubr.bf16.mxu0 0
        %1984 = vmatmul.mubr.bf16.gmra.mrb[0].mxu0 %v1949
        %v1985 = vpop.f32.mrb[0].mxu0
        %v1986 = vadd.f32 %v1935, %v1985
        %v1987 = vpop.f32.mrb[0].mxu0
        %v1988 = vpop.f32.mrb[0].mxu0
        %v1989 = vpop.f32.mrb[0].mxu0
        %1990 = vdwg.mxu0
        %v1991 = vadd.f32 %v1262, %v1986
        %v1992 = vld [vmem:[#allocation8 + $0xa] sm:$0x1]
        %v1993 = vld [vmem:[#allocation8 + $0xb] sm:$0x1]
        %v1994 = vsel %vm552, %v1991, 0.0
        %1995 = vadd.xlane.f32.xlu0 %v1994
        %v1996 = vpop.xlane.xlu0 %1995
        %v1997 = vmul.f32 %v1996, %v1242
        %v1998 = vsub.f32 %v1991, %v1997
        %v1999 = vmul.f32 %v1998, %v1998
        %v2000 = vsel %vm552, %v1999, 0.0
        %2001 = vadd.xlane.f32.xlu0 %v2000
        %v2002 = vpop.xlane.xlu0 %2001
        %v2003 = vmul.f32 %v2002, %v1242
        %v2004 = vadd.f32 %v2003, 1e-05
        %v2005 = vrsqrt.pop %v2004
        %v2006 = vmul.f32 %v1998, %v2005
        %v2007 = vlaneseq
        %v2008 = vshrl.u32 %v2007, 7
        %v2009 = vsub.s32 0, %v2008
        %v2010 = vrot.slane %v1992, %v2009
        %v2011 = vmul.f32 %v2006, %v2010
        %v2012 = vlaneseq
        %v2013 = vshrl.u32 %v2012, 7
        %v2014 = vsub.s32 0, %v2013
        %v2015 = vrot.slane %v1993, %v2014
        %v2016 = vadd.f32 %v2011, %v2015
        %v2017 = vpack.c.bf16 %v2016, %v2016
        %v2018 = vld [vmem:[#allocation10] sm:$0xf]
        %v2019 = vld [vmem:[#allocation10 + $0x4] sm:$0xf]
        %v2020 = vld [vmem:[#allocation10 + $0x8] sm:$0xf]
        %v2021 = vld [vmem:[#allocation10 + $0xc] sm:$0xf]
        %v2022 = vld [vmem:[%s8] sm:$0x1]
        %v2024 = vlaneseq
        %v2025 = vshrl.u32 %v2024, 7
        %v2026 = vsub.s32 0, %v2025
        %v2027 = vrot.slane %v2022, %v2026
        %v2033 = vunpack.c.l.b16 %v2018
        %v2034 = vunpack.c.l.b16 %v2019
        %v2035 = vunpack.c.l.b16 %v2020
        %v2036 = vunpack.c.l.b16 %v2021
        %v2037 = vpack.c.b16 %v2034, %v2033
        %v2038 = vpack.c.b16 %v2036, %v2035
        %v2042 = vsel %vm552, %v2017, 0
        %2044 = vmatprep.subr.bf16.mxu0 0
        %2045 = vmatpush1.bf16.msra.mxu0 %v2037
        %2046 = vmatprep.subr.bf16.mxu0 0
        %2047 = vmatpush1.bf16.msra.mxu0 %v2038
        %2048 = vmatprep.subr.bf16.mxu0 0
        %2049 = vmatpush1.bf16.msra.mxu0 0
        %2050 = vmatprep.subr.bf16.mxu0 0
        %2051 = vmatpush1.bf16.msra.mxu0 0
        %2052 = vmatprep.subr.bf16.mxu0 0
        %2053 = vmatpush1.bf16.msra.mxu0 0
        %2054 = vmatprep.subr.bf16.mxu0 0
        %2055 = vmatpush1.bf16.msra.mxu0 0
        %2056 = vmatprep.subr.bf16.mxu0 0
        %2057 = vmatpush1.bf16.msra.mxu0 0
        %2058 = vmatprep.subr.bf16.mxu0 0
        %2059 = vmatpush1.bf16.msra.mxu0 0
        %2060 = vmatprep.subr.bf16.mxu0 0
        %2061 = vmatpush1.bf16.msra.mxu0 0
        %2062 = vmatprep.subr.bf16.mxu0 0
        %2063 = vmatpush1.bf16.msra.mxu0 0
        %2064 = vmatprep.subr.bf16.mxu0 0
        %2065 = vmatpush1.bf16.msra.mxu0 0
        %2066 = vmatprep.subr.bf16.mxu0 0
        %2067 = vmatpush1.bf16.msra.mxu0 0
        %2068 = vmatprep.subr.bf16.mxu0 0
        %2069 = vmatpush1.bf16.msra.mxu0 0
        %2070 = vmatprep.subr.bf16.mxu0 0
        %2071 = vmatpush1.bf16.msra.mxu0 0
        %2072 = vmatprep.subr.bf16.mxu0 0
        %2073 = vmatpush1.bf16.msra.mxu0 0
        %2074 = vmatprep.subr.bf16.mxu0 0
        %2075 = vmatpush1.bf16.msra.mxu0 0
        %2076 = vmatprep.mubr.bf16.mxu0 0
        %2077 = vmatmul.mubr.bf16.gmra.mrb[0].mxu0 %v2042
        %v2078 = vpop.f32.mrb[0].mxu0
        %v2079 = vadd.f32 %v2027, %v2078
        %v2080 = vpop.f32.mrb[0].mxu0
        %v2081 = vpop.f32.mrb[0].mxu0
        %v2082 = vpop.f32.mrb[0].mxu0
        %2083 = vdwg.mxu0
        %v2084 = vmax.f32 %v2079, 0.0
        %v2085 = vpack.c.bf16 %v2084, %v2084
        %v2086 = vld [vmem:[%s9] sm:$0xf]
        %v2087 = vld [vmem:[%s9 + $0x4] sm:$0xf]
        %v2088 = vld [vmem:[%s9 + $0x8] sm:$0xf]
        %v2089 = vld [vmem:[%s9 + $0xc] sm:$0xf]
        %v2090 = vld [vmem:[%s9 + $0x10] sm:$0xf]
        %v2091 = vld [vmem:[%s9 + $0x14] sm:$0xf]
        %v2092 = vld [vmem:[%s9 + $0x18] sm:$0xf]
        %v2093 = vld [vmem:[%s9 + $0x1c] sm:$0xf]
        %v2094 = vld [vmem:[#allocation8 + $0xc] sm:$0x1]
        %v2095 = vlaneseq
        %v2096 = vshrl.u32 %v2095, 7
        %v2097 = vsub.s32 0, %v2096
        %v2098 = vrot.slane %v2094, %v2097
        %v2107 = vunpack.c.l.b16 %v2086
        %v2108 = vunpack.c.l.b16 %v2087
        %v2109 = vunpack.c.l.b16 %v2088
        %v2110 = vunpack.c.l.b16 %v2089
        %v2111 = vunpack.c.l.b16 %v2090
        %v2112 = vunpack.c.l.b16 %v2091
        %v2113 = vunpack.c.l.b16 %v2092
        %v2114 = vunpack.c.l.b16 %v2093
        %v2115 = vpack.c.b16 %v2108, %v2107
        %v2116 = vpack.c.b16 %v2110, %v2109
        %v2117 = vpack.c.b16 %v2112, %v2111
        %v2118 = vpack.c.b16 %v2114, %v2113
        %vm2123 = vcmask 523264
        %v2125 = vsel %vm2123, %v2085, 0
        %2127 = vmatprep.subr.bf16.mxu0 0
        %2128 = vmatpush1.bf16.msra.mxu0 %v2115
        %2129 = vmatprep.subr.bf16.mxu0 0
        %2130 = vmatpush1.bf16.msra.mxu0 %v2116
        %2131 = vmatprep.subr.bf16.mxu0 0
        %2132 = vmatpush1.bf16.msra.mxu0 %v2117
        %2133 = vmatprep.subr.bf16.mxu0 0
        %2134 = vmatpush1.bf16.msra.mxu0 %v2118
        %2135 = vmatprep.subr.bf16.mxu0 0
        %2136 = vmatpush1.bf16.msra.mxu0 0
        %2137 = vmatprep.subr.bf16.mxu0 0
        %2138 = vmatpush1.bf16.msra.mxu0 0
        %2139 = vmatprep.subr.bf16.mxu0 0
        %2140 = vmatpush1.bf16.msra.mxu0 0
        %2141 = vmatprep.subr.bf16.mxu0 0
        %2142 = vmatpush1.bf16.msra.mxu0 0
        %2143 = vmatprep.subr.bf16.mxu0 0
        %2144 = vmatpush1.bf16.msra.mxu0 0
        %2145 = vmatprep.subr.bf16.mxu0 0
        %2146 = vmatpush1.bf16.msra.mxu0 0
        %2147 = vmatprep.subr.bf16.mxu0 0
        %2148 = vmatpush1.bf16.msra.mxu0 0
        %2149 = vmatprep.subr.bf16.mxu0 0
        %2150 = vmatpush1.bf16.msra.mxu0 0
        %2151 = vmatprep.subr.bf16.mxu0 0
        %2152 = vmatpush1.bf16.msra.mxu0 0
        %2153 = vmatprep.subr.bf16.mxu0 0
        %2154 = vmatpush1.bf16.msra.mxu0 0
        %2155 = vmatprep.subr.bf16.mxu0 0
        %2156 = vmatpush1.bf16.msra.mxu0 0
        %2157 = vmatprep.subr.bf16.mxu0 0
        %2158 = vmatpush1.bf16.msra.mxu0 0
        %2159 = vmatprep.mubr.bf16.mxu0 0
        %2160 = vmatmul.mubr.bf16.gmra.mrb[0].mxu0 %v2125
        %v2161 = vpop.f32.mrb[0].mxu0
        %v2162 = vadd.f32 %v2098, %v2161
        %v2163 = vpop.f32.mrb[0].mxu0
        %v2164 = vpop.f32.mrb[0].mxu0
        %v2165 = vpop.f32.mrb[0].mxu0
        %2166 = vdwg.mxu0
        %v2167 = vadd.f32 %v2016, %v2162
        %v2168 = vld [vmem:[#allocation8 + $0xd] sm:$0x1]
        %v2169 = vld [vmem:[#allocation8 + $0xe] sm:$0x1]
        %v2170 = vsel %vm552, %v2167, 0.0
        %2171 = vadd.xlane.f32.xlu0 %v2170
        %v2172 = vpop.xlane.xlu0 %2171
        %v2173 = vmul.f32 %v2172, %v1242
        %v2174 = vsub.f32 %v2167, %v2173
        %v2175 = vmul.f32 %v2174, %v2174
        %v2176 = vsel %vm552, %v2175, 0.0
        %2177 = vadd.xlane.f32.xlu0 %v2176
        %v2178 = vpop.xlane.xlu0 %2177
        %v2179 = vmul.f32 %v2178, %v1242
        %v2180 = vadd.f32 %v2179, 1e-05
        %v2181 = vrsqrt.pop %v2180
        %v2182 = vmul.f32 %v2174, %v2181
        %v2183 = vlaneseq
        %v2184 = vshrl.u32 %v2183, 7
        %v2185 = vsub.s32 0, %v2184
        %v2186 = vrot.slane %v2168, %v2185
        %v2187 = vmul.f32 %v2182, %v2186
        %v2188 = vlaneseq
        %v2189 = vshrl.u32 %v2188, 7
        %v2190 = vsub.s32 0, %v2189
        %v2191 = vrot.slane %v2169, %v2190
        %v2192 = vadd.f32 %v2187, %v2191
        %2193 = vst.msk [vmem:[%s493] sm:$0xff] %vm552, %v2192
        %s2194 = sand.u32 %s274, 1
        %s2195 = scalar_lea.sflag [#allocation4], %s2194
        %s2196 = sand.u32 %s274, 1
        %s2197 = smul.addr %s2196, 8
        %s2198 = scalar_lea.vmem [#allocation11], %s2197
        // Predicated region
        $region81: #{tpu_custom_call.1} parent=59 // pred_check
          %p2199 = pneg %p284
        $region82: #{tpu_custom_call.1} parent=59 // pred_check_branch
          %2201 = sbr.rel (%p2199) target = $region84
        $region83: #{tpu_custom_call.1} parent=59 // pred_region
          %s2203 = ssub.s32 128, 128
          %2204 = vsyncadd %s2195, %s2203
          %s2205 = smul.addr %s31, 128
          %s2206 = scalar_lea.hbm %s10, %s2205
          %s2208 = sshll.u32 %s2198, 4
          %s2209 = int_to_ptr.vmem [resolvable:$true] %s2208
          %2211 = dma.vmem_to_hbm [thread:$0]  %s2209, 128, %s2206, %s2195
        $region84: #{tpu_custom_call.1} parent=59 // pred_fallthru
          _
      $region60: #{tpu_custom_call.1} parent=5 // pred_fallthru
        _
      %p2212 = scmp.le.s32.totalorder 2, %s26
      // Predicated region
      $region85: #{tpu_custom_call.1} parent=5 // pred_check
        %p2213 = pneg %p2212
      $region86: #{tpu_custom_call.1} parent=5 // pred_check_branch
        %2215 = sbr.rel (%p2213) target = $region88
      $region87: #{tpu_custom_call.1} parent=5 // pred_region
        %s2216 = ssub.s32 %s26, 2
        // Predicated region
        $region89: #{tpu_custom_call.1} parent=87 // pred_check
          %p2217 = pneg %p290
        $region90: #{tpu_custom_call.1} parent=87 // pred_check_branch
          %2219 = sbr.rel (%p2217) target = $region92
        $region91: #{tpu_custom_call.1} parent=87 // pred_region
          %s2220 = sand.u32 %s275, 1
          %s2221 = scalar_lea.sflag [#allocation4], %s2220
          %s2222 = sand.u32 %s275, 1
          %s2223 = smul.addr %s2222, 8
          %s2224 = scalar_lea.vmem [#allocation11], %s2223
          %2225 = dma.done %s2221, 128
        $region92: #{tpu_custom_call.1} parent=87 // pred_fallthru
          _
      $region88: #{tpu_custom_call.1} parent=5 // pred_fallthru
        _
    $region6: #{tpu_custom_call.1} parent=1 // loop_footer
      %s30 = sadd.s32 1, %s26
    $region7: #{tpu_custom_call.1} parent=1 // loop_footer_branch
      %25 = sbr.rel target = $region3
    $region8: #{tpu_custom_call.1} parent=1 // loop_exit
      _
    %2226 = vsyncpa [#allocation3], 1
    %s2227 = scalar_lea.sflag [#allocation3], 1
    %2228 = vsyncpa %s2227, 1
    %2229 = vsyncpa [#allocation6], 1
    %s2230 = scalar_lea.sflag [#allocation6], 1
    %2231 = vsyncpa %s2230, 1
    %2232 = vsyncpa [#allocation9], 1
    %2233 = vsyncpa [#allocation4], 1
    %s2234 = scalar_lea.sflag [#allocation4], 1
    %2235 = vsyncpa %s2234, 1

</llo_original>
